<compile_context>
chip_gen: v6e
topology: v6e:2x2x1
jax: 0.10.0
libtpu: 0.0.40
codegen_flags: <defaults>
</compile_context>

<pallas_src>
import functools

import jax
import jax.numpy as jnp
from jax import lax
from jax.experimental import pallas as pl
from jax.experimental.pallas import tpu as pltpu

EPS = 1e-6          # RMSNorm epsilon
MASK_VALUE = -1e30  # additive causal-mask fill
LANE = 128          # TPU lane width; packed slab column blocks are 128-aligned


# --------------------------------------------------------------------------- #
# Kernel
# --------------------------------------------------------------------------- #
def _transformer_block_kernel(x_ref, const_ref, w_ref, out_ref, *,
                              num_heads, head_dim, intermediate):
  """Whole TransformerBlock forward for one (T, E) slab, fully VMEM-resident."""
  T, E = x_ref.shape
  H, hd = num_heads, head_dim
  D = H * hd
  inter = intermediate
  f32, bf16 = jnp.float32, jnp.bfloat16

  x = x_ref[...]                                    # (T, E) f32
  cos_tab = const_ref[:, 0:LANE]                    # (T, 128) f32
  sin_tab = const_ref[:, LANE:2 * LANE]             # (T, 128) f32
  g_pre = const_ref[0:1, 2 * LANE:2 * LANE + E]     # (1, E) f32
  g_post = const_ref[1:2, 2 * LANE:2 * LANE + E]    # (1, E) f32

  wqkv = w_ref[0:E, 0:2 * LANE]                     # (E, 256) bf16
  w13 = w_ref[0:E, 2 * LANE:2 * LANE + 2 * inter]   # (E, 2*inter) bf16
  w_out = w_ref[E:2 * E, 0:E]                       # (E, E) bf16
  w2 = w_ref[2 * E:2 * E + inter, 0:E]              # (inter, E) bf16

  def rmsnorm(v, g):
    return v * lax.rsqrt(jnp.mean(v * v, axis=-1, keepdims=True) + EPS) * g

  # Causal additive mask built in-register (no mask DMA).
  row = lax.broadcasted_iota(jnp.int32, (T, T), 0)
  col = lax.broadcasted_iota(jnp.int32, (T, T), 1)
  neg_mask = jnp.where(col > row, MASK_VALUE, 0.0).astype(f32)

  # --- pre-attention RMSNorm (f32 VPU math) + fused QKV projection ---
  xn = rmsnorm(x, g_pre)
  # wqkv columns: [Q*s | K | V | 0-pad ->128 | Q@R*s | K@R | 0-pad ->256]
  # (attention scale s = 1/sqrt(hd) and the NeoX rotation folded into weights).
  qkv = jnp.dot(xn.astype(bf16), wqkv, preferred_element_type=f32)    # (T, 256)

  # RoPE as two full-128-lane VPU multiplies + one add:
  #   lanes 0:2D -> roped (scaled) [Q|K],  lanes 2D:3D -> V (cos lane == 1).
  fused = qkv[:, :LANE] * cos_tab + qkv[:, LANE:] * sin_tab           # (T, 128)

  # --- per-head causal attention; accumulate output projection directly ---
  attn = jnp.zeros((T, E), f32)
  for h in range(H):
    q = fused[:, h * hd:(h + 1) * hd]                     # (T, hd), pre-scaled
    k = fused[:, D + h * hd:D + (h + 1) * hd]             # (T, hd)
    v = fused[:, 2 * D + h * hd:2 * D + (h + 1) * hd]     # (T, hd)
    s = lax.dot_general(q, k, (((1,), (1,)), ((), ())),
                        preferred_element_type=f32) + neg_mask
    s = s - jnp.max(s, axis=-1, keepdims=True)
    p = jnp.exp(s)
    p = p / jnp.sum(p, axis=-1, keepdims=True)            # exact softmax norm
    yh = jnp.dot(p, v, preferred_element_type=f32)        # (T, hd)
    attn = attn + jnp.dot(yh.astype(bf16), w_out[h * hd:(h + 1) * hd, :],
                          preferred_element_type=f32)

  # --- residual, post-attention RMSNorm, gated SiLU FF (fused gate+up) ---
  x1 = x + attn
  xn2 = rmsnorm(x1, g_post)
  gu = jnp.dot(xn2.astype(bf16), w13, preferred_element_type=f32)     # (T, 2I)
  g = gu[:, :inter]
  u = gu[:, inter:]
  act = g * pl.reciprocal(1.0 + jnp.exp(-g), approx=True)             # SiLU (EUP)
  ff = jnp.dot((act * u).astype(bf16), w2, preferred_element_type=f32)
  out_ref[...] = x1 + ff


# --------------------------------------------------------------------------- #
# One-time parameter / table packing (hoisted off the per-call path)
# --------------------------------------------------------------------------- #
def _split_qkv_columns(w_qkv, H, G, hd):
  """Slice torch-layout qkv weight into per-head Wq / per-group Wk, Wv lists."""
  q_per_kv = H // G
  total = q_per_kv + 2
  wq, wk, wv = [], [], []
  for g in range(G):
    base = g * total * hd
    for i in range(q_per_kv):
      wq.append(w_qkv[:, base + i * hd:base + (i + 1) * hd])
    wk.append(w_qkv[:, base + q_per_kv * hd:base + (q_per_kv + 1) * hd])
    wv.append(w_qkv[:, base + (q_per_kv + 1) * hd:base + (q_per_kv + 2) * hd])
  return wq, wk, wv


def pack_inputs(params, cos, sin, T, *, num_heads, num_query_groups,
                head_dim, intermediate):
  """Precompute the bf16 weight slab + f32 const slab (call once, reuse)."""
  H, G, hd, inter = num_heads, num_query_groups, head_dim, intermediate
  E = params["w_out"].shape[0]
  D = H * hd
  half = hd // 2
  assert 3 * D <= LANE, "packed layout assumes 3*num_heads*head_dim <= 128"

  scale = 1.0 / (hd ** 0.5)
  wq_l, wk_l, wv_l = _split_qkv_columns(params["w_qkv"], H, G, hd)

  # NeoX rotation rot(t) = concat([-t[half:], t[:half]]) expressed as t @ R.
  idx = jnp.arange(half)
  R = jnp.zeros((hd, hd), jnp.float32)
  R = R.at[idx, idx + half].set(1.0)
  R = R.at[idx + half, idx].set(-1.0)

  wq = jnp.concatenate(wq_l, axis=-1) * scale          # attention scale folded
  wk = jnp.concatenate(wk_l, axis=-1)
  wv = jnp.concatenate(wv_l, axis=-1)
  wqr = jnp.concatenate([w @ R for w in wq_l], axis=-1) * scale
  wkr = jnp.concatenate([w @ R for w in wk_l], axis=-1)

  pad_cos = jnp.zeros((E, LANE - 3 * D), jnp.float32)
  pad_sin = jnp.zeros((E, LANE - 2 * D), jnp.float32)
  wqkv = jnp.concatenate([wq, wk, wv, pad_cos, wqr, wkr, pad_sin],
                         axis=-1)                              # (E, 256)

  w13 = jnp.concatenate([params["w1"], params["w3"]], axis=-1)  # (E, 2*inter)
  top = jnp.concatenate([wqkv, w13], axis=-1)                   # (E, 256+2I)
  wo2 = jnp.concatenate([params["w_out"], params["w2"]], axis=0)  # (E+I, E)
  wo2 = jnp.pad(wo2, ((0, 0), (0, top.shape[1] - E)))
  w_slab = jnp.concatenate([top, wo2], axis=0).astype(jnp.bfloat16)

  # Lane-dense RoPE tables matching the wqkv column layout.
  cos_full = jnp.concatenate([cos, cos], axis=-1)       # torch: cos.repeat(1,2)
  sin_full = jnp.concatenate([sin, sin], axis=-1)
  cos_qk = jnp.tile(cos_full, (1, 2 * H))               # (T, 2*D)
  sin_qk = jnp.tile(sin_full, (1, 2 * H))
  cos_tab = jnp.concatenate(
      [cos_qk, jnp.ones((T, D), jnp.float32),
       jnp.zeros((T, LANE - 3 * D), jnp.float32)], axis=-1)     # (T, 128)
  sin_tab = jnp.concatenate(
      [sin_qk, jnp.zeros((T, LANE - 2 * D), jnp.float32)], axis=-1)  # (T, 128)
  norm_cols = jnp.zeros((T, E), jnp.float32)
  norm_cols = norm_cols.at[0].set(params["w_pre"]).at[1].set(params["w_post"])
  const = jnp.concatenate([cos_tab, sin_tab, norm_cols],
                          axis=-1).astype(jnp.float32)          # (T, 256+E)
  return {"w_slab": w_slab, "const": const}


# --------------------------------------------------------------------------- #
# Wrapper
# --------------------------------------------------------------------------- #
def transformer_block(x, packed, *, num_heads, head_dim, intermediate):
  """x: (1, T, E) f32; packed: dict from pack_inputs.  Returns (1, T, E)."""
  B, T, E = x.shape
  assert B == 1, "Currently only batch_size = 1 is supported."
  # TODO(synk): GQA (num_query_groups < num_heads), rotary_percentage < 1.0,
  # the KV-cache update path (kv_utils.update) and the HLFB wrapper are not
  # modeled in this stateless kernel.
  vm = pl.BlockSpec(memory_space=pltpu.MemorySpace.VMEM)
  kern = functools.partial(_transformer_block_kernel, num_heads=num_heads,
                           head_dim=head_dim, intermediate=intermediate)
  out = pl.pallas_call(
      kern,
      out_shape=jax.ShapeDtypeStruct((T, E), jnp.float32),
      in_specs=[vm, vm, vm],
      out_specs=vm,
  )(x[0], packed["const"], packed["w_slab"])
  return out[None]   # (1, T, E); kv_cache is None in this stateless path


# --------------------------------------------------------------------------- #
# Synthetic params + independent reference
# --------------------------------------------------------------------------- #
def init_params(key, E, H, G, hd, inter):
  """Deterministic synthetic parameters in the torch module's layout."""
  assert H == G, "script uses MHA (num_query_groups == num_heads)"
  ks = jax.random.split(key, 8)
  qkv_out = (H + 2 * G) * hd
  return {
      "w_qkv": jax.random.normal(ks[0], (E, qkv_out), jnp.float32) * 0.02,
      "w_out": jax.random.normal(ks[1], (E, E), jnp.float32) * 0.02,
      "w_pre": 1.0 + 0.1 * jax.random.normal(ks[2], (E,), jnp.float32),
      "w_post": 1.0 + 0.1 * jax.random.normal(ks[3], (E,), jnp.float32),
      "w1": jax.random.normal(ks[4], (E, inter), jnp.float32) * 0.02,  # gate
      "w3": jax.random.normal(ks[5], (E, inter), jnp.float32) * 0.02,  # up
      "w2": jax.random.normal(ks[6], (inter, E), jnp.float32) * 0.02,  # down
  }


def reference(x, cos, sin, p, *, num_heads, num_query_groups, head_dim):
  """Pure-JAX reference mirroring the module with bf16-at-MXU-boundary casts."""
  bf16 = jnp.bfloat16
  f32 = jnp.float32
  xs = x[0]
  T, E = xs.shape

  def norm(v, w):
    return v * lax.rsqrt(jnp.mean(v * v, -1, keepdims=True) + EPS) * w

  xn = norm(xs, p["w_pre"])
  wq_l, wk_l, wv_l = _split_qkv_columns(p["w_qkv"], num_heads,
                                        num_query_groups, head_dim)
  wq = jnp.stack(wq_l).astype(bf16)   # (H, E, hd)
  wk = jnp.stack(wk_l).astype(bf16)
  wv = jnp.stack(wv_l).astype(bf16)
  xnb = xn.astype(bf16)
  q = jnp.einsum("te,hed->htd", xnb, wq, preferred_element_type=f32)
  k = jnp.einsum("te,hed->htd", xnb, wk, preferred_element_type=f32)
  v = jnp.einsum("te,hed->htd", xnb, wv, preferred_element_type=f32)

  cf = jnp.concatenate([cos, cos], -1)
  sf = jnp.concatenate([sin, sin], -1)

  def rope(t):
    half = t.shape[-1] // 2
    rot = jnp.concatenate([-t[..., half:], t[..., :half]], -1)
    return t * cf + rot * sf

  q, k = rope(q), rope(k)
  mask = jnp.where(jnp.arange(T)[None, :] > jnp.arange(T)[:, None],
                   MASK_VALUE, 0.0).astype(f32)
  s = jnp.einsum("htd,hsd->hts", q, k,
                 preferred_element_type=f32) / jnp.sqrt(float(head_dim)) + mask
  att = jax.nn.softmax(s, axis=-1)
  y = jnp.einsum("hts,hsd->htd", att, v, preferred_element_type=f32)
  y = jnp.transpose(y, (1, 0, 2)).reshape(T, E)
  x1 = xs + jnp.dot(y.astype(bf16), p["w_out"].astype(bf16),
                    preferred_element_type=f32)
  xn2 = norm(x1, p["w_post"])
  xn2b = xn2.astype(bf16)
  g = jnp.dot(xn2b, p["w1"].astype(bf16), preferred_element_type=f32)
  u = jnp.dot(xn2b, p["w3"].astype(bf16), preferred_element_type=f32)
  ff = jnp.dot((jax.nn.silu(g) * u).astype(bf16), p["w2"].astype(bf16),
               preferred_element_type=f32)
  return (x1 + ff)[None]


# --------------------------------------------------------------------------- #
if __name__ == "__main__":
  B, T, E = 1, 8, 32
  H = G = 4
  hd = E // H
  inter = 64

  key = jax.random.PRNGKey(0)
  k_x, k_p = jax.random.split(key)
  x = jax.random.normal(k_x, (B, T, E), jnp.float32)
  params = init_params(k_p, E, H, G, hd, inter)

  # RoPE cache (rotary_percentage = 1.0 -> n_elem = head_dim)
  pos = jnp.arange(T, dtype=jnp.float32)
  inv_freq = 1.0 / (10000.0 ** (jnp.arange(0, hd, 2, dtype=jnp.float32) / hd))
  freqs = pos[:, None] * inv_freq[None, :]          # (T, hd//2)
  cos, sin = jnp.cos(freqs), jnp.sin(freqs)

  # One-time packing, hoisted out of the per-call path.
  packed = pack_inputs(params, cos, sin, T, num_heads=H, num_query_groups=G,
                       head_dim=hd, intermediate=inter)
  packed = jax.tree_util.tree_map(jax.block_until_ready, packed)

  block = jax.jit(functools.partial(transformer_block, num_heads=H,
                                    head_dim=hd, intermediate=inter))
  out = block(x, packed)
  out = jax.block_until_ready(out)

  ref = reference(x, cos, sin, params, num_heads=H, num_query_groups=G,
                  head_dim=hd)
  assert out.shape == (B, T, E)
  assert jnp.allclose(out, ref, rtol=2e-3, atol=2e-3), "mismatch vs reference"

  print("KERNEL_OK")
</pallas_src>

<mosaic_0001>
module attributes {stable_mosaic.version = 11 : i64} {
  func.func @_transformer_block_kernel(%arg0: memref<8x32xf32, #tpu.memory_space<vmem>>, %arg1: memref<8x288xf32, #tpu.memory_space<vmem>>, %arg2: memref<128x384xbf16, #tpu.memory_space<vmem>>, %arg3: memref<8x32xf32, #tpu.memory_space<vmem>>) attributes {dimension_semantics = [], scalar_prefetch = 0 : i64, scratch_operands = 0 : i64, tpu.core_type = #tpu.core_type<tc>} {
    %c0 = arith.constant 0 : index
    %c0_0 = arith.constant 0 : index
    %0 = vector.load %arg0[%c0, %c0_0] : memref<8x32xf32, #tpu.memory_space<vmem>>, vector<8x32xf32>
    %c0_1 = arith.constant 0 : index
    %c0_2 = arith.constant 0 : index
    %1 = vector.load %arg1[%c0_1, %c0_2] : memref<8x288xf32, #tpu.memory_space<vmem>>, vector<8x128xf32>
    %c0_3 = arith.constant 0 : index
    %c128 = arith.constant 128 : index
    %2 = vector.load %arg1[%c0_3, %c128] : memref<8x288xf32, #tpu.memory_space<vmem>>, vector<8x128xf32>
    %c0_4 = arith.constant 0 : index
    %c256 = arith.constant 256 : index
    %3 = vector.load %arg1[%c0_4, %c256] : memref<8x288xf32, #tpu.memory_space<vmem>>, vector<1x32xf32>
    %c1 = arith.constant 1 : index
    %c256_5 = arith.constant 256 : index
    %4 = vector.load %arg1[%c1, %c256_5] : memref<8x288xf32, #tpu.memory_space<vmem>>, vector<1x32xf32>
    %c0_6 = arith.constant 0 : index
    %c0_7 = arith.constant 0 : index
    %5 = vector.load %arg2[%c0_6, %c0_7] : memref<128x384xbf16, #tpu.memory_space<vmem>>, vector<32x256xbf16>
    %c0_8 = arith.constant 0 : index
    %c256_9 = arith.constant 256 : index
    %6 = vector.load %arg2[%c0_8, %c256_9] : memref<128x384xbf16, #tpu.memory_space<vmem>>, vector<32x128xbf16>
    %c32 = arith.constant 32 : index
    %c0_10 = arith.constant 0 : index
    %7 = vector.load %arg2[%c32, %c0_10] : memref<128x384xbf16, #tpu.memory_space<vmem>>, vector<32x32xbf16>
    %c64 = arith.constant 64 : index
    %c0_11 = arith.constant 0 : index
    %8 = vector.load %arg2[%c64, %c0_11] : memref<128x384xbf16, #tpu.memory_space<vmem>>, vector<64x32xbf16>
    %9 = tpu.iota {dimensions = array<i32: 0>} : vector<8x8xi32>
    %10 = tpu.iota {dimensions = array<i32: 1>} : vector<8x8xi32>
    %11 = arith.cmpi sgt, %10, %9 : vector<8x8xi32>
    %cst = arith.constant -1.000000e+30 : f32
    %cst_12 = arith.constant 0.000000e+00 : f32
    %12 = vector.broadcast %cst : f32 to vector<8x8xf32>
    %13 = vector.broadcast %cst_12 : f32 to vector<8x8xf32>
    %14 = arith.select %11, %12, %13 : vector<8x8xi1>, vector<8x8xf32>
    %15 = arith.mulf %0, %0 : vector<8x32xf32>
    %cst_13 = arith.constant dense<0.000000e+00> : vector<8xf32>
    %16 = vector.multi_reduction <add>, %15, %cst_13 [1] : vector<8x32xf32> to vector<8xf32>
    %17 = vector.shape_cast %16 : vector<8xf32> to vector<8x1xf32>
    %cst_14 = arith.constant 3.200000e+01 : f32
    %18 = vector.broadcast %cst_14 : f32 to vector<8x1xf32>
    %19 = arith.divf %17, %18 : vector<8x1xf32>
    %cst_15 = arith.constant 9.99999997E-7 : f32
    %20 = vector.broadcast %cst_15 : f32 to vector<8x1xf32>
    %21 = arith.addf %19, %20 : vector<8x1xf32>
    %22 = math.rsqrt %21 : vector<8x1xf32>
    %23 = vector.broadcast %22 : vector<8x1xf32> to vector<8x32xf32>
    %24 = arith.mulf %0, %23 : vector<8x32xf32>
    %25 = vector.broadcast %3 : vector<1x32xf32> to vector<8x32xf32>
    %26 = arith.mulf %24, %25 : vector<8x32xf32>
    %27 = arith.truncf %26 : vector<8x32xf32> to vector<8x32xbf16>
    %cst_16 = arith.constant dense<0.000000e+00> : vector<8x256xf32>
    %28 = tpu.matmul %27, %5, %cst_16 {dimension_numbers = #tpu.dot_dimension_numbers<[1], [0], [0], [1], [0, 0, 1, 1], [], []>} : vector<8x32xbf16>, vector<32x256xbf16>, vector<8x256xf32> -> vector<8x256xf32>
    %29 = vector.extract_strided_slice %28 {offsets = [0, 0], sizes = [8, 128], strides = [1, 1]} : vector<8x256xf32> to vector<8x128xf32>
    %30 = arith.mulf %29, %1 : vector<8x128xf32>
    %31 = vector.extract_strided_slice %28 {offsets = [0, 128], sizes = [8, 128], strides = [1, 1]} : vector<8x256xf32> to vector<8x128xf32>
    %32 = arith.mulf %31, %2 : vector<8x128xf32>
    %33 = arith.addf %30, %32 : vector<8x128xf32>
    %cst_17 = arith.constant 0.000000e+00 : f32
    %34 = vector.broadcast %cst_17 : f32 to vector<8x32xf32>
    %35 = vector.extract_strided_slice %33 {offsets = [0, 0], sizes = [8, 8], strides = [1, 1]} : vector<8x128xf32> to vector<8x8xf32>
    %36 = vector.extract_strided_slice %33 {offsets = [0, 32], sizes = [8, 8], strides = [1, 1]} : vector<8x128xf32> to vector<8x8xf32>
    %37 = vector.extract_strided_slice %33 {offsets = [0, 64], sizes = [8, 8], strides = [1, 1]} : vector<8x128xf32> to vector<8x8xf32>
    %cst_18 = arith.constant dense<0.000000e+00> : vector<8x8xf32>
    %38 = tpu.matmul %35, %36, %cst_18 {dimension_numbers = #tpu.dot_dimension_numbers<[1], [1], [0], [0], [0, 0, 1, 0], [], []>} : vector<8x8xf32>, vector<8x8xf32>, vector<8x8xf32> -> vector<8x8xf32>
    %39 = arith.addf %38, %14 : vector<8x8xf32>
    %cst_19 = arith.constant dense<0xFF800000> : vector<8xf32>
    %40 = vector.multi_reduction <maximumf>, %39, %cst_19 [1] : vector<8x8xf32> to vector<8xf32>
    %41 = vector.shape_cast %40 : vector<8xf32> to vector<8x1xf32>
    %42 = vector.broadcast %41 : vector<8x1xf32> to vector<8x8xf32>
    %43 = arith.subf %39, %42 : vector<8x8xf32>
    %44 = math.exp %43 : vector<8x8xf32>
    %cst_20 = arith.constant dense<0.000000e+00> : vector<8xf32>
    %45 = vector.multi_reduction <add>, %44, %cst_20 [1] : vector<8x8xf32> to vector<8xf32>
    %46 = vector.shape_cast %45 : vector<8xf32> to vector<8x1xf32>
    %47 = vector.broadcast %46 : vector<8x1xf32> to vector<8x8xf32>
    %48 = arith.divf %44, %47 : vector<8x8xf32>
    %cst_21 = arith.constant dense<0.000000e+00> : vector<8x8xf32>
    %49 = tpu.matmul %48, %37, %cst_21 {dimension_numbers = #tpu.dot_dimension_numbers<[1], [0], [0], [1], [0, 0, 1, 1], [], []>} : vector<8x8xf32>, vector<8x8xf32>, vector<8x8xf32> -> vector<8x8xf32>
    %50 = arith.truncf %49 : vector<8x8xf32> to vector<8x8xbf16>
    %51 = vector.extract_strided_slice %7 {offsets = [0, 0], sizes = [8, 32], strides = [1, 1]} : vector<32x32xbf16> to vector<8x32xbf16>
    %cst_22 = arith.constant dense<0.000000e+00> : vector<8x32xf32>
    %52 = tpu.matmul %50, %51, %cst_22 {dimension_numbers = #tpu.dot_dimension_numbers<[1], [0], [0], [1], [0, 0, 1, 1], [], []>} : vector<8x8xbf16>, vector<8x32xbf16>, vector<8x32xf32> -> vector<8x32xf32>
    %53 = arith.addf %34, %52 : vector<8x32xf32>
    %54 = vector.extract_strided_slice %33 {offsets = [0, 8], sizes = [8, 8], strides = [1, 1]} : vector<8x128xf32> to vector<8x8xf32>
    %55 = vector.extract_strided_slice %33 {offsets = [0, 40], sizes = [8, 8], strides = [1, 1]} : vector<8x128xf32> to vector<8x8xf32>
    %56 = vector.extract_strided_slice %33 {offsets = [0, 72], sizes = [8, 8], strides = [1, 1]} : vector<8x128xf32> to vector<8x8xf32>
    %cst_23 = arith.constant dense<0.000000e+00> : vector<8x8xf32>
    %57 = tpu.matmul %54, %55, %cst_23 {dimension_numbers = #tpu.dot_dimension_numbers<[1], [1], [0], [0], [0, 0, 1, 0], [], []>} : vector<8x8xf32>, vector<8x8xf32>, vector<8x8xf32> -> vector<8x8xf32>
    %58 = arith.addf %57, %14 : vector<8x8xf32>
    %cst_24 = arith.constant dense<0xFF800000> : vector<8xf32>
    %59 = vector.multi_reduction <maximumf>, %58, %cst_24 [1] : vector<8x8xf32> to vector<8xf32>
    %60 = vector.shape_cast %59 : vector<8xf32> to vector<8x1xf32>
    %61 = vector.broadcast %60 : vector<8x1xf32> to vector<8x8xf32>
    %62 = arith.subf %58, %61 : vector<8x8xf32>
    %63 = math.exp %62 : vector<8x8xf32>
    %cst_25 = arith.constant dense<0.000000e+00> : vector<8xf32>
    %64 = vector.multi_reduction <add>, %63, %cst_25 [1] : vector<8x8xf32> to vector<8xf32>
    %65 = vector.shape_cast %64 : vector<8xf32> to vector<8x1xf32>
    %66 = vector.broadcast %65 : vector<8x1xf32> to vector<8x8xf32>
    %67 = arith.divf %63, %66 : vector<8x8xf32>
    %cst_26 = arith.constant dense<0.000000e+00> : vector<8x8xf32>
    %68 = tpu.matmul %67, %56, %cst_26 {dimension_numbers = #tpu.dot_dimension_numbers<[1], [0], [0], [1], [0, 0, 1, 1], [], []>} : vector<8x8xf32>, vector<8x8xf32>, vector<8x8xf32> -> vector<8x8xf32>
    %69 = arith.truncf %68 : vector<8x8xf32> to vector<8x8xbf16>
    %70 = vector.extract_strided_slice %7 {offsets = [8, 0], sizes = [8, 32], strides = [1, 1]} : vector<32x32xbf16> to vector<8x32xbf16>
    %cst_27 = arith.constant dense<0.000000e+00> : vector<8x32xf32>
    %71 = tpu.matmul %69, %70, %cst_27 {dimension_numbers = #tpu.dot_dimension_numbers<[1], [0], [0], [1], [0, 0, 1, 1], [], []>} : vector<8x8xbf16>, vector<8x32xbf16>, vector<8x32xf32> -> vector<8x32xf32>
    %72 = arith.addf %53, %71 : vector<8x32xf32>
    %73 = vector.extract_strided_slice %33 {offsets = [0, 16], sizes = [8, 8], strides = [1, 1]} : vector<8x128xf32> to vector<8x8xf32>
    %74 = vector.extract_strided_slice %33 {offsets = [0, 48], sizes = [8, 8], strides = [1, 1]} : vector<8x128xf32> to vector<8x8xf32>
    %75 = vector.extract_strided_slice %33 {offsets = [0, 80], sizes = [8, 8], strides = [1, 1]} : vector<8x128xf32> to vector<8x8xf32>
    %cst_28 = arith.constant dense<0.000000e+00> : vector<8x8xf32>
    %76 = tpu.matmul %73, %74, %cst_28 {dimension_numbers = #tpu.dot_dimension_numbers<[1], [1], [0], [0], [0, 0, 1, 0], [], []>} : vector<8x8xf32>, vector<8x8xf32>, vector<8x8xf32> -> vector<8x8xf32>
    %77 = arith.addf %76, %14 : vector<8x8xf32>
    %cst_29 = arith.constant dense<0xFF800000> : vector<8xf32>
    %78 = vector.multi_reduction <maximumf>, %77, %cst_29 [1] : vector<8x8xf32> to vector<8xf32>
    %79 = vector.shape_cast %78 : vector<8xf32> to vector<8x1xf32>
    %80 = vector.broadcast %79 : vector<8x1xf32> to vector<8x8xf32>
    %81 = arith.subf %77, %80 : vector<8x8xf32>
    %82 = math.exp %81 : vector<8x8xf32>
    %cst_30 = arith.constant dense<0.000000e+00> : vector<8xf32>
    %83 = vector.multi_reduction <add>, %82, %cst_30 [1] : vector<8x8xf32> to vector<8xf32>
    %84 = vector.shape_cast %83 : vector<8xf32> to vector<8x1xf32>
    %85 = vector.broadcast %84 : vector<8x1xf32> to vector<8x8xf32>
    %86 = arith.divf %82, %85 : vector<8x8xf32>
    %cst_31 = arith.constant dense<0.000000e+00> : vector<8x8xf32>
    %87 = tpu.matmul %86, %75, %cst_31 {dimension_numbers = #tpu.dot_dimension_numbers<[1], [0], [0], [1], [0, 0, 1, 1], [], []>} : vector<8x8xf32>, vector<8x8xf32>, vector<8x8xf32> -> vector<8x8xf32>
    %88 = arith.truncf %87 : vector<8x8xf32> to vector<8x8xbf16>
    %89 = vector.extract_strided_slice %7 {offsets = [16, 0], sizes = [8, 32], strides = [1, 1]} : vector<32x32xbf16> to vector<8x32xbf16>
    %cst_32 = arith.constant dense<0.000000e+00> : vector<8x32xf32>
    %90 = tpu.matmul %88, %89, %cst_32 {dimension_numbers = #tpu.dot_dimension_numbers<[1], [0], [0], [1], [0, 0, 1, 1], [], []>} : vector<8x8xbf16>, vector<8x32xbf16>, vector<8x32xf32> -> vector<8x32xf32>
    %91 = arith.addf %72, %90 : vector<8x32xf32>
    %92 = vector.extract_strided_slice %33 {offsets = [0, 24], sizes = [8, 8], strides = [1, 1]} : vector<8x128xf32> to vector<8x8xf32>
    %93 = vector.extract_strided_slice %33 {offsets = [0, 56], sizes = [8, 8], strides = [1, 1]} : vector<8x128xf32> to vector<8x8xf32>
    %94 = vector.extract_strided_slice %33 {offsets = [0, 88], sizes = [8, 8], strides = [1, 1]} : vector<8x128xf32> to vector<8x8xf32>
    %cst_33 = arith.constant dense<0.000000e+00> : vector<8x8xf32>
    %95 = tpu.matmul %92, %93, %cst_33 {dimension_numbers = #tpu.dot_dimension_numbers<[1], [1], [0], [0], [0, 0, 1, 0], [], []>} : vector<8x8xf32>, vector<8x8xf32>, vector<8x8xf32> -> vector<8x8xf32>
    %96 = arith.addf %95, %14 : vector<8x8xf32>
    %cst_34 = arith.constant dense<0xFF800000> : vector<8xf32>
    %97 = vector.multi_reduction <maximumf>, %96, %cst_34 [1] : vector<8x8xf32> to vector<8xf32>
    %98 = vector.shape_cast %97 : vector<8xf32> to vector<8x1xf32>
    %99 = vector.broadcast %98 : vector<8x1xf32> to vector<8x8xf32>
    %100 = arith.subf %96, %99 : vector<8x8xf32>
    %101 = math.exp %100 : vector<8x8xf32>
    %cst_35 = arith.constant dense<0.000000e+00> : vector<8xf32>
    %102 = vector.multi_reduction <add>, %101, %cst_35 [1] : vector<8x8xf32> to vector<8xf32>
    %103 = vector.shape_cast %102 : vector<8xf32> to vector<8x1xf32>
    %104 = vector.broadcast %103 : vector<8x1xf32> to vector<8x8xf32>
    %105 = arith.divf %101, %104 : vector<8x8xf32>
    %cst_36 = arith.constant dense<0.000000e+00> : vector<8x8xf32>
    %106 = tpu.matmul %105, %94, %cst_36 {dimension_numbers = #tpu.dot_dimension_numbers<[1], [0], [0], [1], [0, 0, 1, 1], [], []>} : vector<8x8xf32>, vector<8x8xf32>, vector<8x8xf32> -> vector<8x8xf32>
    %107 = arith.truncf %106 : vector<8x8xf32> to vector<8x8xbf16>
    %108 = vector.extract_strided_slice %7 {offsets = [24, 0], sizes = [8, 32], strides = [1, 1]} : vector<32x32xbf16> to vector<8x32xbf16>
    %cst_37 = arith.constant dense<0.000000e+00> : vector<8x32xf32>
    %109 = tpu.matmul %107, %108, %cst_37 {dimension_numbers = #tpu.dot_dimension_numbers<[1], [0], [0], [1], [0, 0, 1, 1], [], []>} : vector<8x8xbf16>, vector<8x32xbf16>, vector<8x32xf32> -> vector<8x32xf32>
    %110 = arith.addf %91, %109 : vector<8x32xf32>
    %111 = arith.addf %0, %110 : vector<8x32xf32>
    %112 = arith.mulf %111, %111 : vector<8x32xf32>
    %cst_38 = arith.constant dense<0.000000e+00> : vector<8xf32>
    %113 = vector.multi_reduction <add>, %112, %cst_38 [1] : vector<8x32xf32> to vector<8xf32>
    %114 = vector.shape_cast %113 : vector<8xf32> to vector<8x1xf32>
    %cst_39 = arith.constant 3.200000e+01 : f32
    %115 = vector.broadcast %cst_39 : f32 to vector<8x1xf32>
    %116 = arith.divf %114, %115 : vector<8x1xf32>
    %cst_40 = arith.constant 9.99999997E-7 : f32
    %117 = vector.broadcast %cst_40 : f32 to vector<8x1xf32>
    %118 = arith.addf %116, %117 : vector<8x1xf32>
    %119 = math.rsqrt %118 : vector<8x1xf32>
    %120 = vector.broadcast %119 : vector<8x1xf32> to vector<8x32xf32>
    %121 = arith.mulf %111, %120 : vector<8x32xf32>
    %122 = vector.broadcast %4 : vector<1x32xf32> to vector<8x32xf32>
    %123 = arith.mulf %121, %122 : vector<8x32xf32>
    %124 = arith.truncf %123 : vector<8x32xf32> to vector<8x32xbf16>
    %cst_41 = arith.constant dense<0.000000e+00> : vector<8x128xf32>
    %125 = tpu.matmul %124, %6, %cst_41 {dimension_numbers = #tpu.dot_dimension_numbers<[1], [0], [0], [1], [0, 0, 1, 1], [], []>} : vector<8x32xbf16>, vector<32x128xbf16>, vector<8x128xf32> -> vector<8x128xf32>
    %126 = vector.extract_strided_slice %125 {offsets = [0, 0], sizes = [8, 64], strides = [1, 1]} : vector<8x128xf32> to vector<8x64xf32>
    %127 = vector.extract_strided_slice %125 {offsets = [0, 64], sizes = [8, 64], strides = [1, 1]} : vector<8x128xf32> to vector<8x64xf32>
    %cst_42 = arith.constant 0.000000e+00 : f32
    %128 = vector.broadcast %cst_42 : f32 to vector<8x64xf32>
    %129 = arith.subf %128, %126 : vector<8x64xf32>
    %130 = math.exp %129 : vector<8x64xf32>
    %cst_43 = arith.constant 1.000000e+00 : f32
    %131 = vector.broadcast %cst_43 : f32 to vector<8x64xf32>
    %132 = arith.addf %131, %130 : vector<8x64xf32>
    %133 = tpu.reciprocal %132 {approx = true} : vector<8x64xf32> -> vector<8x64xf32>
    %134 = arith.mulf %126, %133 : vector<8x64xf32>
    %135 = arith.mulf %134, %127 : vector<8x64xf32>
    %136 = arith.truncf %135 : vector<8x64xf32> to vector<8x64xbf16>
    %cst_44 = arith.constant dense<0.000000e+00> : vector<8x32xf32>
    %137 = tpu.matmul %136, %8, %cst_44 {dimension_numbers = #tpu.dot_dimension_numbers<[1], [0], [0], [1], [0, 0, 1, 1], [], []>} : vector<8x64xbf16>, vector<64x32xbf16>, vector<8x32xf32> -> vector<8x32xf32>
    %138 = arith.addf %111, %137 : vector<8x32xf32>
    %c0_45 = arith.constant 0 : index
    %c0_46 = arith.constant 0 : index
    %139 = vector.load %arg3[%c0_45, %c0_46] : memref<8x32xf32, #tpu.memory_space<vmem>>, vector<8x32xf32>
    tpu.vector_store %arg3[%c0_45, %c0_46], %138 {strides = array<i32>} : memref<8x32xf32, #tpu.memory_space<vmem>>, vector<8x32xf32>,
    return
  }
}

</mosaic_0001>

<llo_original>
// kernel: transformer_block.1
$region0: #{transformer_block.1}
  #allocation0 [shape = 'u32[]', space=smem, size = 0x4, offset = 0x4, fixed_abs, tag = 'smem constant byte address 0x4 - core index']
  #allocation1 [shape = 'u32[144,128]{1,0:T(1,128)}', space=vmem, size = 0x12000, scoped, tag = 'internal scratch']
  %s0 = inlined_call_operand.hbm [shape: f32[8,32], index: 0, kind: input, shape index: {}]
  %s1 = inlined_call_operand.hbm [shape: f32[8,288], index: 1, kind: input, shape index: {}]
  %s2 = inlined_call_operand.hbm [shape: bf16[128,384], index: 2, kind: input, shape index: {}]
  %s3 = inlined_call_operand.hbm [shape: f32[8,32], index: 3, kind: output, shape index: {}]
  %s4 = sld [smem:[#allocation0]]
  $region34: #{transformer_block.1} parent=0
    _
  %s6 = ssub.s32 1, %s4
  %s7 = scalar_select 0, %s6, %s4
  $region1: #{transformer_block.1} parent=0
    #allocation2 [shape = 'u8[4096]{0}', space=vmem, size = 0x1000, scoped, tag = 'input window, operand 0, single buffered']
    #allocation3 [shape = 's32[1]{0}', space=sflag, size = 0x4, scoped, tag = 'scoped memory for transformer_block.1']
    #allocation4 [shape = 's32[1]{0}', space=sflag, size = 0x4, scoped, tag = 'scoped memory for transformer_block.1']
    #allocation5 [shape = 'u8[12288]{0}', space=vmem, size = 0x3000, scoped, tag = 'input window, operand 1, single buffered']
    #allocation6 [shape = 's32[1]{0}', space=sflag, size = 0x4, scoped, tag = 'scoped memory for transformer_block.1']
    #allocation7 [shape = 'u8[98304]{0}', space=vmem, size = 0x18000, scoped, tag = 'input window, operand 2, single buffered']
    #allocation8 [shape = 'u8[4096]{0}', space=vmem, size = 0x1000, scoped, tag = 'output window, operand 0, single buffered']
    %8 = vsyncpa [#allocation3], 0
    %9 = vsyncpa [#allocation6], 0
    %10 = vsyncpa [#allocation4], 0
    // Predicated region
    $region2: #{transformer_block.1} parent=1 // pred_check
      _
    $region3: #{transformer_block.1} parent=1 // pred_check_branch
      %12 = sbr.rel (0) target = $region5
    $region4: #{transformer_block.1} parent=1 // pred_region
      %s14 = ssub.s32 128, 128
      %15 = vsyncadd [#allocation3], %s14
      %s17 = sshll.u32 [#allocation2], 4
      %s18 = int_to_ptr.vmem [resolvable:$true] %s17
      %20 = dma.hbm_to_vmem [thread:$0]  %s0, 128, %s18, [#allocation3]
    $region5: #{transformer_block.1} parent=1 // pred_fallthru
      _
    // Predicated region
    $region6: #{transformer_block.1} parent=1 // pred_check
      _
    $region7: #{transformer_block.1} parent=1 // pred_check_branch
      %22 = sbr.rel (0) target = $region9
    $region8: #{transformer_block.1} parent=1 // pred_region
      %s24 = ssub.s32 384, 384
      %25 = vsyncadd [#allocation6], %s24
      %s27 = sshll.u32 [#allocation5], 4
      %s28 = int_to_ptr.vmem [resolvable:$true] %s27
      %30 = dma.hbm_to_vmem [thread:$0]  %s1, 384, %s28, [#allocation6]
    $region9: #{transformer_block.1} parent=1 // pred_fallthru
      _
    // Predicated region
    $region10: #{transformer_block.1} parent=1 // pred_check
      _
    $region11: #{transformer_block.1} parent=1 // pred_check_branch
      %32 = sbr.rel (0) target = $region13
    $region12: #{transformer_block.1} parent=1 // pred_region
      %s34 = ssub.s32 3072, 3072
      %35 = vsyncadd [#allocation6], %s34
      %s36 = sshll.u32 [#allocation7], 4
      %s37 = int_to_ptr.vmem [resolvable:$true] %s36
      %42 = dma.hbm_to_vmem [thread:$0]  %s2, 3072, %s37, [#allocation6], 192, 192, 12
    $region13: #{transformer_block.1} parent=1 // pred_fallthru
      _
    // Predicated region
    $region14: #{transformer_block.1} parent=1 // pred_check
      _
    $region15: #{transformer_block.1} parent=1 // pred_check_branch
      %44 = sbr.rel (0) target = $region17
    $region16: #{transformer_block.1} parent=1 // pred_region
      %45 = dma.done [#allocation3], 128
    $region17: #{transformer_block.1} parent=1 // pred_fallthru
      _
    // Predicated region
    $region18: #{transformer_block.1} parent=1 // pred_check
      _
    $region19: #{transformer_block.1} parent=1 // pred_check_branch
      %47 = sbr.rel (0) target = $region21
    $region20: #{transformer_block.1} parent=1 // pred_region
      %48 = dma.done [#allocation6], 384
    $region21: #{transformer_block.1} parent=1 // pred_fallthru
      _
    // Predicated region
    $region22: #{transformer_block.1} parent=1 // pred_check
      _
    $region23: #{transformer_block.1} parent=1 // pred_check_branch
      %50 = sbr.rel (0) target = $region25
    $region24: #{transformer_block.1} parent=1 // pred_region
      %51 = dma.done [#allocation6], 3072
    $region25: #{transformer_block.1} parent=1 // pred_fallthru
      _
    %v53 = vld [vmem:[#allocation2] sm:$0xff]
    %v54 = vld [vmem:[#allocation5] sm:$0xff]
    %v55 = vld [vmem:[#allocation5 + $0x8] sm:$0xff]
    %v56 = vld [vmem:[#allocation5 + $0x10] ss:$0 sm:$0xff]
    %v57 = vld [vmem:[#allocation5 + $0x11] ss:$0 sm:$0xff]
    %v58 = vld [vmem:[#allocation7] sm:$0xff]
    %v59 = vld [vmem:[#allocation7 + $0xc] sm:$0xff]
    %v60 = vld [vmem:[#allocation7 + $0x18] sm:$0xff]
    %v61 = vld [vmem:[#allocation7 + $0x24] sm:$0xff]
    %v62 = vld [vmem:[#allocation7 + $0x8] sm:$0xf]
    %v63 = vld [vmem:[#allocation7 + $0x14] sm:$0xf]
    %v64 = vld [vmem:[#allocation7 + $0x20] sm:$0xf]
    %v65 = vld [vmem:[#allocation7 + $0x2c] sm:$0xf]
    %v66 = vld [vmem:[#allocation7 + $0x30] sm:$0xf]
    %v67 = vld [vmem:[#allocation7 + $0x3c] sm:$0xf]
    %v68 = vld [vmem:[#allocation7 + $0x48] sm:$0xf]
    %v69 = vld [vmem:[#allocation7 + $0x54] sm:$0xf]
    %v70 = vld [vmem:[#allocation7 + $0x60] sm:$0xf]
    %v71 = vld [vmem:[#allocation7 + $0x6c] sm:$0xf]
    %v72 = vld [vmem:[#allocation7 + $0x78] sm:$0xf]
    %v73 = vld [vmem:[#allocation7 + $0x84] sm:$0xf]
    %v74 = vld [vmem:[#allocation7 + $0x90] sm:$0xf]
    %v75 = vld [vmem:[#allocation7 + $0x9c] sm:$0xf]
    %v76 = vld [vmem:[#allocation7 + $0xa8] sm:$0xf]
    %v77 = vld [vmem:[#allocation7 + $0xb4] sm:$0xf]
    %v78 = vlaneseq
    %v79 = vshrl.u32 %v78, 7
    %v80 = vlaneseq
    %v81 = vand.u32 %v80, 127
    %vm82 = vcmp.gt.s32.totalorder %v81, %v79
    %v83 = vsel %vm82, -1e+30, 0.0
    %v84 = vmul.f32 %v53, %v53
    %vm85 = vcmask 261120
    %v86 = vsel %vm85, %v84, 0.0
    %87 = vadd.xlane.f32.xlu0 %v86
    %v88 = vpop.xlane.xlu0 %87
    %v89 = vrcp.pop 32.0
    %v90 = vmul.f32 %v88, %v89
    %v91 = vadd.f32 %v90, 1e-06
    %v92 = vrsqrt.pop %v91
    %v93 = vmul.f32 %v53, %v92
    %v94 = vmul.f32 %v93, %v56
    %v95 = vpack.c.bf16 %v94, %v94
    %v100 = vunpack.c.l.b16 %v58
    %v101 = vunpack.c.h.b16 %v58
    %v102 = vunpack.c.l.b16 %v59
    %v103 = vunpack.c.h.b16 %v59
    %v104 = vunpack.c.l.b16 %v60
    %v105 = vunpack.c.h.b16 %v60
    %v106 = vunpack.c.l.b16 %v61
    %v107 = vunpack.c.h.b16 %v61
    %v108 = vpack.c.b16 %v102, %v100
    %v109 = vpack.c.b16 %v103, %v101
    %v110 = vpack.c.b16 %v106, %v104
    %v111 = vpack.c.b16 %v107, %v105
    %v117 = vsel %vm85, %v95, 0
    %119 = vmatprep.subr.bf16.mxu0 0
    %120 = vmatpush1.bf16.msra.mxu0 0
    %121 = vmatprep.subr.bf16.mxu0 0
    %122 = vmatpush1.bf16.msra.mxu0 0
    %123 = vmatprep.subr.bf16.mxu0 0
    %124 = vmatpush1.bf16.msra.mxu0 0
    %125 = vmatprep.subr.bf16.mxu0 0
    %126 = vmatpush1.bf16.msra.mxu0 0
    %127 = vmatprep.subr.bf16.mxu0 0
    %128 = vmatpush1.bf16.msra.mxu0 0
    %129 = vmatprep.subr.bf16.mxu0 0
    %130 = vmatpush1.bf16.msra.mxu0 0
    %131 = vmatprep.subr.bf16.mxu0 %v111
    %132 = vmatpush1.bf16.msra.mxu0 %v110
    %133 = vmatprep.subr.bf16.mxu0 %v109
    %134 = vmatpush1.bf16.msra.mxu0 %v108
    %135 = vmatprep.subr.bf16.mxu0 0
    %136 = vmatpush2.bf16.msra.mxu0 0
    %137 = vmatprep.subr.bf16.mxu0 0
    %138 = vmatpush2.bf16.msra.mxu0 0
    %139 = vmatprep.subr.bf16.mxu0 0
    %140 = vmatpush2.bf16.msra.mxu0 0
    %141 = vmatprep.subr.bf16.mxu0 0
    %142 = vmatpush2.bf16.msra.mxu0 0
    %143 = vmatprep.subr.bf16.mxu0 0
    %144 = vmatpush2.bf16.msra.mxu0 0
    %145 = vmatprep.subr.bf16.mxu0 0
    %146 = vmatpush2.bf16.msra.mxu0 0
    %147 = vmatprep.subr.bf16.mxu0 0
    %148 = vmatpush2.bf16.msra.mxu0 0
    %149 = vmatprep.subr.bf16.mxu0 0
    %150 = vmatpush2.bf16.msra.mxu0 0
    %151 = vmatprep.mubr.bf16.mxu0 0
    %152 = vmatmul.mubr.bf16.gmra.mxu0 %v117
    %v153 = vpop.f32.mrf.mxu0
    %v154 = vadd.f32 0.0, %v153
    %v155 = vpop.f32.mrf.mxu0
    %v156 = vadd.f32 0.0, %v155
    %v157 = vpop.f32.mrf.mxu0
    %v158 = vpop.f32.mrf.mxu0
    %159 = vdwg.mxu0
    %v160 = vmul.f32 %v154, %v54
    %v161 = vmul.f32 %v156, %v55
    %v162 = vadd.f32 %v160, %v161
    %164 = vrot.lane.b32.xlu0 %v162, 96
    %v165 = vpop.permute.xlu0 %164
    %vm166 = vcmask 64512
    %v167 = vsel %vm166, %v162, 0
    %v169 = vsel %vm166, %v165, 0
    %171 = vmatprep.subr.mxu0 0.0
    %172 = vmatpush1.xpose.msra.mxu0 0.0
    %173 = vmatprep.subr.mxu0 0.0
    %174 = vmatpush1.xpose.msra.mxu0 0.0
    %175 = vmatprep.subr.mxu0 0.0
    %176 = vmatpush1.xpose.msra.mxu0 0.0
    %177 = vmatprep.subr.mxu0 0.0
    %178 = vmatpush1.xpose.msra.mxu0 0.0
    %179 = vmatprep.subr.mxu0 0.0
    %180 = vmatpush1.xpose.msra.mxu0 0.0
    %181 = vmatprep.subr.mxu0 0.0
    %182 = vmatpush1.xpose.msra.mxu0 0.0
    %183 = vmatprep.subr.mxu0 0.0
    %184 = vmatpush1.xpose.msra.mxu0 0.0
    %185 = vmatprep.subr.mxu0 0.0
    %186 = vmatpush1.xpose.msra.mxu0 0.0
    %187 = vmatprep.subr.mxu0 0.0
    %188 = vmatpush1.xpose.msra.mxu0 0.0
    %189 = vmatprep.subr.mxu0 0.0
    %190 = vmatpush1.xpose.msra.mxu0 0.0
    %191 = vmatprep.subr.mxu0 0.0
    %192 = vmatpush1.xpose.msra.mxu0 0.0
    %193 = vmatprep.subr.mxu0 0.0
    %194 = vmatpush1.xpose.msra.mxu0 0.0
    %195 = vmatprep.subr.mxu0 0.0
    %196 = vmatpush1.xpose.msra.mxu0 0.0
    %197 = vmatprep.subr.mxu0 0.0
    %198 = vmatpush1.xpose.msra.mxu0 0.0
    %199 = vmatprep.subr.mxu0 0.0
    %200 = vmatpush1.xpose.msra.mxu0 0.0
    %201 = vmatprep.subr.mxu0 0.0
    %202 = vmatpush1.xpose.msra.mxu0 %v169
    %203 = vmatprep.subr.mxu0 0.0
    %204 = vmatpush2.xpose.msra.mxu0 0.0
    %205 = vmatprep.subr.mxu0 0.0
    %206 = vmatpush2.xpose.msra.mxu0 0.0
    %207 = vmatprep.subr.mxu0 0.0
    %208 = vmatpush2.xpose.msra.mxu0 0.0
    %209 = vmatprep.subr.mxu0 0.0
    %210 = vmatpush2.xpose.msra.mxu0 0.0
    %211 = vmatprep.subr.mxu0 0.0
    %212 = vmatpush2.xpose.msra.mxu0 0.0
    %213 = vmatprep.subr.mxu0 0.0
    %214 = vmatpush2.xpose.msra.mxu0 0.0
    %215 = vmatprep.subr.mxu0 0.0
    %216 = vmatpush2.xpose.msra.mxu0 0.0
    %217 = vmatprep.subr.mxu0 0.0
    %218 = vmatpush2.xpose.msra.mxu0 0.0
    %219 = vmatprep.subr.mxu0 0.0
    %220 = vmatpush2.xpose.msra.mxu0 0.0
    %221 = vmatprep.subr.mxu0 0.0
    %222 = vmatpush2.xpose.msra.mxu0 0.0
    %223 = vmatprep.subr.mxu0 0.0
    %224 = vmatpush2.xpose.msra.mxu0 0.0
    %225 = vmatprep.subr.mxu0 0.0
    %226 = vmatpush2.xpose.msra.mxu0 0.0
    %227 = vmatprep.subr.mxu0 0.0
    %228 = vmatpush2.xpose.msra.mxu0 0.0
    %229 = vmatprep.subr.mxu0 0.0
    %230 = vmatpush2.xpose.msra.mxu0 0.0
    %231 = vmatprep.subr.mxu0 0.0
    %232 = vmatpush2.xpose.msra.mxu0 0.0
    %233 = vmatprep.subr.mxu0 0.0
    %234 = vmatpush2.xpose.msra.mxu0 0.0
    %235 = vmatprep.mubr.f32.mxu0 0.0
    %236 = vmatmul.mubr.f32.gmra.mxu0 %v167
    %v237 = vpop.f32.mrf.mxu0
    %v238 = vadd.f32 %v83, %v237
    %v239 = vpop.f32.mrf.mxu0
    %240 = vdwg.mxu0
    %v241 = vsel %vm166, %v238, -inf
    %242 = vmax.xlane.f32.xlu0 %v241
    %v243 = vpop.xlane.xlu0 %242
    %v244 = vsub.f32 %v238, %v243
    %v245 = vmul.f32 %v244, 1.442695
    %v246 = vpow.pop %v245
    %v247 = vsel %vm166, %v246, 0.0
    %248 = vadd.xlane.f32.xlu0 %v247
    %v249 = vpop.xlane.xlu0 %248
    %v250 = vrcp.pop %v249
    %v251 = vmul.f32 %v246, %v250
    %252 = vrot.lane.b32.xlu0 %v162, 64
    %v253 = vpop.permute.xlu0 %252
    %v256 = vsel %vm166, %v251, 0
    %258 = vmatprep.subr.mxu0 0.0
    %259 = vmatpush1.msra.mxu0 0.0
    %260 = vmatprep.subr.mxu0 0.0
    %261 = vmatpush1.msra.mxu0 0.0
    %262 = vmatprep.subr.mxu0 0.0
    %263 = vmatpush1.msra.mxu0 0.0
    %264 = vmatprep.subr.mxu0 0.0
    %265 = vmatpush1.msra.mxu0 0.0
    %266 = vmatprep.subr.mxu0 0.0
    %267 = vmatpush1.msra.mxu0 0.0
    %268 = vmatprep.subr.mxu0 0.0
    %269 = vmatpush1.msra.mxu0 0.0
    %270 = vmatprep.subr.mxu0 0.0
    %271 = vmatpush1.msra.mxu0 0.0
    %272 = vmatprep.subr.mxu0 0.0
    %273 = vmatpush1.msra.mxu0 0.0
    %274 = vmatprep.subr.mxu0 0.0
    %275 = vmatpush1.msra.mxu0 0.0
    %276 = vmatprep.subr.mxu0 0.0
    %277 = vmatpush1.msra.mxu0 0.0
    %278 = vmatprep.subr.mxu0 0.0
    %279 = vmatpush1.msra.mxu0 0.0
    %280 = vmatprep.subr.mxu0 0.0
    %281 = vmatpush1.msra.mxu0 0.0
    %282 = vmatprep.subr.mxu0 0.0
    %283 = vmatpush1.msra.mxu0 0.0
    %284 = vmatprep.subr.mxu0 0.0
    %285 = vmatpush1.msra.mxu0 0.0
    %286 = vmatprep.subr.mxu0 0.0
    %287 = vmatpush1.msra.mxu0 0.0
    %288 = vmatprep.subr.mxu0 0.0
    %289 = vmatpush1.msra.mxu0 %v253
    %290 = vmatprep.subr.mxu0 0.0
    %291 = vmatpush2.msra.mxu0 0.0
    %292 = vmatprep.subr.mxu0 0.0
    %293 = vmatpush2.msra.mxu0 0.0
    %294 = vmatprep.subr.mxu0 0.0
    %295 = vmatpush2.msra.mxu0 0.0
    %296 = vmatprep.subr.mxu0 0.0
    %297 = vmatpush2.msra.mxu0 0.0
    %298 = vmatprep.subr.mxu0 0.0
    %299 = vmatpush2.msra.mxu0 0.0
    %300 = vmatprep.subr.mxu0 0.0
    %301 = vmatpush2.msra.mxu0 0.0
    %302 = vmatprep.subr.mxu0 0.0
    %303 = vmatpush2.msra.mxu0 0.0
    %304 = vmatprep.subr.mxu0 0.0
    %305 = vmatpush2.msra.mxu0 0.0
    %306 = vmatprep.subr.mxu0 0.0
    %307 = vmatpush2.msra.mxu0 0.0
    %308 = vmatprep.subr.mxu0 0.0
    %309 = vmatpush2.msra.mxu0 0.0
    %310 = vmatprep.subr.mxu0 0.0
    %311 = vmatpush2.msra.mxu0 0.0
    %312 = vmatprep.subr.mxu0 0.0
    %313 = vmatpush2.msra.mxu0 0.0
    %314 = vmatprep.subr.mxu0 0.0
    %315 = vmatpush2.msra.mxu0 0.0
    %316 = vmatprep.subr.mxu0 0.0
    %317 = vmatpush2.msra.mxu0 0.0
    %318 = vmatprep.subr.mxu0 0.0
    %319 = vmatpush2.msra.mxu0 0.0
    %320 = vmatprep.subr.mxu0 0.0
    %321 = vmatpush2.msra.mxu0 0.0
    %322 = vmatprep.mubr.f32.mxu0 0.0
    %323 = vmatmul.mubr.f32.gmra.mxu0 %v256
    %v324 = vpop.f32.mrf.mxu0
    %v325 = vadd.f32 0.0, %v324
    %v326 = vpop.f32.mrf.mxu0
    %327 = vdwg.mxu0
    %v328 = vpack.c.bf16 %v325, %v325
    %329 = vrot.lane.b32.xlu0 %v162, 120
    %v330 = vpop.permute.xlu0 %329
    %331 = vrot.lane.b32.xlu0 %v162, 88
    %v332 = vpop.permute.xlu0 %331
    %v333 = vsel %vm166, %v330, 0
    %v335 = vsel %vm166, %v332, 0
    %337 = vmatprep.subr.mxu0 0.0
    %338 = vmatpush1.xpose.msra.mxu0 0.0
    %339 = vmatprep.subr.mxu0 0.0
    %340 = vmatpush1.xpose.msra.mxu0 0.0
    %341 = vmatprep.subr.mxu0 0.0
    %342 = vmatpush1.xpose.msra.mxu0 0.0
    %343 = vmatprep.subr.mxu0 0.0
    %344 = vmatpush1.xpose.msra.mxu0 0.0
    %345 = vmatprep.subr.mxu0 0.0
    %346 = vmatpush1.xpose.msra.mxu0 0.0
    %347 = vmatprep.subr.mxu0 0.0
    %348 = vmatpush1.xpose.msra.mxu0 0.0
    %349 = vmatprep.subr.mxu0 0.0
    %350 = vmatpush1.xpose.msra.mxu0 0.0
    %351 = vmatprep.subr.mxu0 0.0
    %352 = vmatpush1.xpose.msra.mxu0 0.0
    %353 = vmatprep.subr.mxu0 0.0
    %354 = vmatpush1.xpose.msra.mxu0 0.0
    %355 = vmatprep.subr.mxu0 0.0
    %356 = vmatpush1.xpose.msra.mxu0 0.0
    %357 = vmatprep.subr.mxu0 0.0
    %358 = vmatpush1.xpose.msra.mxu0 0.0
    %359 = vmatprep.subr.mxu0 0.0
    %360 = vmatpush1.xpose.msra.mxu0 0.0
    %361 = vmatprep.subr.mxu0 0.0
    %362 = vmatpush1.xpose.msra.mxu0 0.0
    %363 = vmatprep.subr.mxu0 0.0
    %364 = vmatpush1.xpose.msra.mxu0 0.0
    %365 = vmatprep.subr.mxu0 0.0
    %366 = vmatpush1.xpose.msra.mxu0 0.0
    %367 = vmatprep.subr.mxu0 0.0
    %368 = vmatpush1.xpose.msra.mxu0 %v335
    %369 = vmatprep.subr.mxu0 0.0
    %370 = vmatpush2.xpose.msra.mxu0 0.0
    %371 = vmatprep.subr.mxu0 0.0
    %372 = vmatpush2.xpose.msra.mxu0 0.0
    %373 = vmatprep.subr.mxu0 0.0
    %374 = vmatpush2.xpose.msra.mxu0 0.0
    %375 = vmatprep.subr.mxu0 0.0
    %376 = vmatpush2.xpose.msra.mxu0 0.0
    %377 = vmatprep.subr.mxu0 0.0
    %378 = vmatpush2.xpose.msra.mxu0 0.0
    %379 = vmatprep.subr.mxu0 0.0
    %380 = vmatpush2.xpose.msra.mxu0 0.0
    %381 = vmatprep.subr.mxu0 0.0
    %382 = vmatpush2.xpose.msra.mxu0 0.0
    %383 = vmatprep.subr.mxu0 0.0
    %384 = vmatpush2.xpose.msra.mxu0 0.0
    %385 = vmatprep.subr.mxu0 0.0
    %386 = vmatpush2.xpose.msra.mxu0 0.0
    %387 = vmatprep.subr.mxu0 0.0
    %388 = vmatpush2.xpose.msra.mxu0 0.0
    %389 = vmatprep.subr.mxu0 0.0
    %390 = vmatpush2.xpose.msra.mxu0 0.0
    %391 = vmatprep.subr.mxu0 0.0
    %392 = vmatpush2.xpose.msra.mxu0 0.0
    %393 = vmatprep.subr.mxu0 0.0
    %394 = vmatpush2.xpose.msra.mxu0 0.0
    %395 = vmatprep.subr.mxu0 0.0
    %396 = vmatpush2.xpose.msra.mxu0 0.0
    %397 = vmatprep.subr.mxu0 0.0
    %398 = vmatpush2.xpose.msra.mxu0 0.0
    %399 = vmatprep.subr.mxu0 0.0
    %400 = vmatpush2.xpose.msra.mxu0 0.0
    %401 = vmatprep.mubr.f32.mxu0 0.0
    %402 = vmatmul.mubr.f32.gmra.mxu0 %v333
    %v403 = vpop.f32.mrf.mxu0
    %v404 = vadd.f32 %v83, %v403
    %v405 = vpop.f32.mrf.mxu0
    %406 = vdwg.mxu0
    %v407 = vsel %vm166, %v404, -inf
    %408 = vmax.xlane.f32.xlu0 %v407
    %v409 = vpop.xlane.xlu0 %408
    %v410 = vsub.f32 %v404, %v409
    %v411 = vmul.f32 %v410, 1.442695
    %v412 = vpow.pop %v411
    %v413 = vsel %vm166, %v412, 0.0
    %414 = vadd.xlane.f32.xlu0 %v413
    %v415 = vpop.xlane.xlu0 %414
    %v416 = vrcp.pop %v415
    %v417 = vmul.f32 %v412, %v416
    %418 = vrot.lane.b32.xlu0 %v162, 56
    %v419 = vpop.permute.xlu0 %418
    %v422 = vsel %vm166, %v417, 0
    %424 = vmatprep.subr.mxu0 0.0
    %425 = vmatpush1.msra.mxu0 0.0
    %426 = vmatprep.subr.mxu0 0.0
    %427 = vmatpush1.msra.mxu0 0.0
    %428 = vmatprep.subr.mxu0 0.0
    %429 = vmatpush1.msra.mxu0 0.0
    %430 = vmatprep.subr.mxu0 0.0
    %431 = vmatpush1.msra.mxu0 0.0
    %432 = vmatprep.subr.mxu0 0.0
    %433 = vmatpush1.msra.mxu0 0.0
    %434 = vmatprep.subr.mxu0 0.0
    %435 = vmatpush1.msra.mxu0 0.0
    %436 = vmatprep.subr.mxu0 0.0
    %437 = vmatpush1.msra.mxu0 0.0
    %438 = vmatprep.subr.mxu0 0.0
    %439 = vmatpush1.msra.mxu0 0.0
    %440 = vmatprep.subr.mxu0 0.0
    %441 = vmatpush1.msra.mxu0 0.0
    %442 = vmatprep.subr.mxu0 0.0
    %443 = vmatpush1.msra.mxu0 0.0
    %444 = vmatprep.subr.mxu0 0.0
    %445 = vmatpush1.msra.mxu0 0.0
    %446 = vmatprep.subr.mxu0 0.0
    %447 = vmatpush1.msra.mxu0 0.0
    %448 = vmatprep.subr.mxu0 0.0
    %449 = vmatpush1.msra.mxu0 0.0
    %450 = vmatprep.subr.mxu0 0.0
    %451 = vmatpush1.msra.mxu0 0.0
    %452 = vmatprep.subr.mxu0 0.0
    %453 = vmatpush1.msra.mxu0 0.0
    %454 = vmatprep.subr.mxu0 0.0
    %455 = vmatpush1.msra.mxu0 %v419
    %456 = vmatprep.subr.mxu0 0.0
    %457 = vmatpush2.msra.mxu0 0.0
    %458 = vmatprep.subr.mxu0 0.0
    %459 = vmatpush2.msra.mxu0 0.0
    %460 = vmatprep.subr.mxu0 0.0
    %461 = vmatpush2.msra.mxu0 0.0
    %462 = vmatprep.subr.mxu0 0.0
    %463 = vmatpush2.msra.mxu0 0.0
    %464 = vmatprep.subr.mxu0 0.0
    %465 = vmatpush2.msra.mxu0 0.0
    %466 = vmatprep.subr.mxu0 0.0
    %467 = vmatpush2.msra.mxu0 0.0
    %468 = vmatprep.subr.mxu0 0.0
    %469 = vmatpush2.msra.mxu0 0.0
    %470 = vmatprep.subr.mxu0 0.0
    %471 = vmatpush2.msra.mxu0 0.0
    %472 = vmatprep.subr.mxu0 0.0
    %473 = vmatpush2.msra.mxu0 0.0
    %474 = vmatprep.subr.mxu0 0.0
    %475 = vmatpush2.msra.mxu0 0.0
    %476 = vmatprep.subr.mxu0 0.0
    %477 = vmatpush2.msra.mxu0 0.0
    %478 = vmatprep.subr.mxu0 0.0
    %479 = vmatpush2.msra.mxu0 0.0
    %480 = vmatprep.subr.mxu0 0.0
    %481 = vmatpush2.msra.mxu0 0.0
    %482 = vmatprep.subr.mxu0 0.0
    %483 = vmatpush2.msra.mxu0 0.0
    %484 = vmatprep.subr.mxu0 0.0
    %485 = vmatpush2.msra.mxu0 0.0
    %486 = vmatprep.subr.mxu0 0.0
    %487 = vmatpush2.msra.mxu0 0.0
    %488 = vmatprep.mubr.f32.mxu0 0.0
    %489 = vmatmul.mubr.f32.gmra.mxu0 %v422
    %v490 = vpop.f32.mrf.mxu0
    %v491 = vadd.f32 0.0, %v490
    %v492 = vpop.f32.mrf.mxu0
    %493 = vdwg.mxu0
    %v494 = vpack.c.bf16 %v491, %v491
    %v496 = vsel %vm166, %v494, 0
    %vm498 = vcmask 1043456
    %v500 = vsel %vm498, %v67, 0
    %502 = vmatprep.subr.bf16.mxu0 0
    %503 = vmatpush1.bf16.msra.mxu0 0
    %504 = vmatprep.subr.bf16.mxu0 0
    %505 = vmatpush1.bf16.msra.mxu0 0
    %506 = vmatprep.subr.bf16.mxu0 0
    %507 = vmatpush1.bf16.msra.mxu0 0
    %508 = vmatprep.subr.bf16.mxu0 0
    %509 = vmatpush1.bf16.msra.mxu0 0
    %510 = vmatprep.subr.bf16.mxu0 0
    %511 = vmatpush1.bf16.msra.mxu0 0
    %512 = vmatprep.subr.bf16.mxu0 0
    %513 = vmatpush1.bf16.msra.mxu0 0
    %514 = vmatprep.subr.bf16.mxu0 0
    %515 = vmatpush1.bf16.msra.mxu0 0
    %516 = vmatprep.subr.bf16.mxu0 0
    %517 = vmatpush1.bf16.msra.mxu0 %v500
    %518 = vmatprep.subr.bf16.mxu0 0
    %519 = vmatpush2.bf16.msra.mxu0 0
    %520 = vmatprep.subr.bf16.mxu0 0
    %521 = vmatpush2.bf16.msra.mxu0 0
    %522 = vmatprep.subr.bf16.mxu0 0
    %523 = vmatpush2.bf16.msra.mxu0 0
    %524 = vmatprep.subr.bf16.mxu0 0
    %525 = vmatpush2.bf16.msra.mxu0 0
    %526 = vmatprep.subr.bf16.mxu0 0
    %527 = vmatpush2.bf16.msra.mxu0 0
    %528 = vmatprep.subr.bf16.mxu0 0
    %529 = vmatpush2.bf16.msra.mxu0 0
    %530 = vmatprep.subr.bf16.mxu0 0
    %531 = vmatpush2.bf16.msra.mxu0 0
    %532 = vmatprep.subr.bf16.mxu0 0
    %533 = vmatpush2.bf16.msra.mxu0 0
    %534 = vmatprep.mubr.bf16.mxu0 0
    %535 = vmatmul.mubr.bf16.gmra.mxu0 %v496
    %v536 = vpop.f32.mrf.mxu0
    %v537 = vadd.f32 0.0, %v536
    %v538 = vpop.f32.mrf.mxu0
    %v539 = vpop.f32.mrf.mxu0
    %v540 = vpop.f32.mrf.mxu0
    %541 = vdwg.mxu0
    %v543 = vsel %vm166, %v328, 0
    %v546 = vsel %vm498, %v66, 0
    %548 = vmatprep.subr.bf16.mxu0 0
    %549 = vmatpush1.bf16.msra.mxu0 0
    %550 = vmatprep.subr.bf16.mxu0 0
    %551 = vmatpush1.bf16.msra.mxu0 0
    %552 = vmatprep.subr.bf16.mxu0 0
    %553 = vmatpush1.bf16.msra.mxu0 0
    %554 = vmatprep.subr.bf16.mxu0 0
    %555 = vmatpush1.bf16.msra.mxu0 0
    %556 = vmatprep.subr.bf16.mxu0 0
    %557 = vmatpush1.bf16.msra.mxu0 0
    %558 = vmatprep.subr.bf16.mxu0 0
    %559 = vmatpush1.bf16.msra.mxu0 0
    %560 = vmatprep.subr.bf16.mxu0 0
    %561 = vmatpush1.bf16.msra.mxu0 0
    %562 = vmatprep.subr.bf16.mxu0 0
    %563 = vmatpush1.bf16.msra.mxu0 %v546
    %564 = vmatprep.subr.bf16.mxu0 0
    %565 = vmatpush2.bf16.msra.mxu0 0
    %566 = vmatprep.subr.bf16.mxu0 0
    %567 = vmatpush2.bf16.msra.mxu0 0
    %568 = vmatprep.subr.bf16.mxu0 0
    %569 = vmatpush2.bf16.msra.mxu0 0
    %570 = vmatprep.subr.bf16.mxu0 0
    %571 = vmatpush2.bf16.msra.mxu0 0
    %572 = vmatprep.subr.bf16.mxu0 0
    %573 = vmatpush2.bf16.msra.mxu0 0
    %574 = vmatprep.subr.bf16.mxu0 0
    %575 = vmatpush2.bf16.msra.mxu0 0
    %576 = vmatprep.subr.bf16.mxu0 0
    %577 = vmatpush2.bf16.msra.mxu0 0
    %578 = vmatprep.subr.bf16.mxu0 0
    %579 = vmatpush2.bf16.msra.mxu0 0
    %580 = vmatprep.mubr.bf16.mxu0 0
    %581 = vmatmul.mubr.bf16.gmra.mxu0 %v543
    %v582 = vpop.f32.mrf.mxu0
    %v583 = vadd.f32 %v537, %v582
    %v584 = vpop.f32.mrf.mxu0
    %v585 = vpop.f32.mrf.mxu0
    %v586 = vpop.f32.mrf.mxu0
    %587 = vdwg.mxu0
    %588 = vrot.lane.b32.xlu0 %v162, 112
    %v589 = vpop.permute.xlu0 %588
    %590 = vrot.lane.b32.xlu0 %v162, 80
    %v591 = vpop.permute.xlu0 %590
    %v592 = vsel %vm166, %v589, 0
    %v594 = vsel %vm166, %v591, 0
    %596 = vmatprep.subr.mxu0 0.0
    %597 = vmatpush1.xpose.msra.mxu0 0.0
    %598 = vmatprep.subr.mxu0 0.0
    %599 = vmatpush1.xpose.msra.mxu0 0.0
    %600 = vmatprep.subr.mxu0 0.0
    %601 = vmatpush1.xpose.msra.mxu0 0.0
    %602 = vmatprep.subr.mxu0 0.0
    %603 = vmatpush1.xpose.msra.mxu0 0.0
    %604 = vmatprep.subr.mxu0 0.0
    %605 = vmatpush1.xpose.msra.mxu0 0.0
    %606 = vmatprep.subr.mxu0 0.0
    %607 = vmatpush1.xpose.msra.mxu0 0.0
    %608 = vmatprep.subr.mxu0 0.0
    %609 = vmatpush1.xpose.msra.mxu0 0.0
    %610 = vmatprep.subr.mxu0 0.0
    %611 = vmatpush1.xpose.msra.mxu0 0.0
    %612 = vmatprep.subr.mxu0 0.0
    %613 = vmatpush1.xpose.msra.mxu0 0.0
    %614 = vmatprep.subr.mxu0 0.0
    %615 = vmatpush1.xpose.msra.mxu0 0.0
    %616 = vmatprep.subr.mxu0 0.0
    %617 = vmatpush1.xpose.msra.mxu0 0.0
    %618 = vmatprep.subr.mxu0 0.0
    %619 = vmatpush1.xpose.msra.mxu0 0.0
    %620 = vmatprep.subr.mxu0 0.0
    %621 = vmatpush1.xpose.msra.mxu0 0.0
    %622 = vmatprep.subr.mxu0 0.0
    %623 = vmatpush1.xpose.msra.mxu0 0.0
    %624 = vmatprep.subr.mxu0 0.0
    %625 = vmatpush1.xpose.msra.mxu0 0.0
    %626 = vmatprep.subr.mxu0 0.0
    %627 = vmatpush1.xpose.msra.mxu0 %v594
    %628 = vmatprep.subr.mxu0 0.0
    %629 = vmatpush2.xpose.msra.mxu0 0.0
    %630 = vmatprep.subr.mxu0 0.0
    %631 = vmatpush2.xpose.msra.mxu0 0.0
    %632 = vmatprep.subr.mxu0 0.0
    %633 = vmatpush2.xpose.msra.mxu0 0.0
    %634 = vmatprep.subr.mxu0 0.0
    %635 = vmatpush2.xpose.msra.mxu0 0.0
    %636 = vmatprep.subr.mxu0 0.0
    %637 = vmatpush2.xpose.msra.mxu0 0.0
    %638 = vmatprep.subr.mxu0 0.0
    %639 = vmatpush2.xpose.msra.mxu0 0.0
    %640 = vmatprep.subr.mxu0 0.0
    %641 = vmatpush2.xpose.msra.mxu0 0.0
    %642 = vmatprep.subr.mxu0 0.0
    %643 = vmatpush2.xpose.msra.mxu0 0.0
    %644 = vmatprep.subr.mxu0 0.0
    %645 = vmatpush2.xpose.msra.mxu0 0.0
    %646 = vmatprep.subr.mxu0 0.0
    %647 = vmatpush2.xpose.msra.mxu0 0.0
    %648 = vmatprep.subr.mxu0 0.0
    %649 = vmatpush2.xpose.msra.mxu0 0.0
    %650 = vmatprep.subr.mxu0 0.0
    %651 = vmatpush2.xpose.msra.mxu0 0.0
    %652 = vmatprep.subr.mxu0 0.0
    %653 = vmatpush2.xpose.msra.mxu0 0.0
    %654 = vmatprep.subr.mxu0 0.0
    %655 = vmatpush2.xpose.msra.mxu0 0.0
    %656 = vmatprep.subr.mxu0 0.0
    %657 = vmatpush2.xpose.msra.mxu0 0.0
    %658 = vmatprep.subr.mxu0 0.0
    %659 = vmatpush2.xpose.msra.mxu0 0.0
    %660 = vmatprep.mubr.f32.mxu0 0.0
    %661 = vmatmul.mubr.f32.gmra.mxu0 %v592
    %v662 = vpop.f32.mrf.mxu0
    %v663 = vadd.f32 %v83, %v662
    %v664 = vpop.f32.mrf.mxu0
    %665 = vdwg.mxu0
    %v666 = vsel %vm166, %v663, -inf
    %667 = vmax.xlane.f32.xlu0 %v666
    %v668 = vpop.xlane.xlu0 %667
    %v669 = vsub.f32 %v663, %v668
    %v670 = vmul.f32 %v669, 1.442695
    %v671 = vpow.pop %v670
    %v672 = vsel %vm166, %v671, 0.0
    %673 = vadd.xlane.f32.xlu0 %v672
    %v674 = vpop.xlane.xlu0 %673
    %v675 = vrcp.pop %v674
    %v676 = vmul.f32 %v671, %v675
    %677 = vrot.lane.b32.xlu0 %v162, 48
    %v678 = vpop.permute.xlu0 %677
    %v681 = vsel %vm166, %v676, 0
    %683 = vmatprep.subr.mxu0 0.0
    %684 = vmatpush1.msra.mxu0 0.0
    %685 = vmatprep.subr.mxu0 0.0
    %686 = vmatpush1.msra.mxu0 0.0
    %687 = vmatprep.subr.mxu0 0.0
    %688 = vmatpush1.msra.mxu0 0.0
    %689 = vmatprep.subr.mxu0 0.0
    %690 = vmatpush1.msra.mxu0 0.0
    %691 = vmatprep.subr.mxu0 0.0
    %692 = vmatpush1.msra.mxu0 0.0
    %693 = vmatprep.subr.mxu0 0.0
    %694 = vmatpush1.msra.mxu0 0.0
    %695 = vmatprep.subr.mxu0 0.0
    %696 = vmatpush1.msra.mxu0 0.0
    %697 = vmatprep.subr.mxu0 0.0
    %698 = vmatpush1.msra.mxu0 0.0
    %699 = vmatprep.subr.mxu0 0.0
    %700 = vmatpush1.msra.mxu0 0.0
    %701 = vmatprep.subr.mxu0 0.0
    %702 = vmatpush1.msra.mxu0 0.0
    %703 = vmatprep.subr.mxu0 0.0
    %704 = vmatpush1.msra.mxu0 0.0
    %705 = vmatprep.subr.mxu0 0.0
    %706 = vmatpush1.msra.mxu0 0.0
    %707 = vmatprep.subr.mxu0 0.0
    %708 = vmatpush1.msra.mxu0 0.0
    %709 = vmatprep.subr.mxu0 0.0
    %710 = vmatpush1.msra.mxu0 0.0
    %711 = vmatprep.subr.mxu0 0.0
    %712 = vmatpush1.msra.mxu0 0.0
    %713 = vmatprep.subr.mxu0 0.0
    %714 = vmatpush1.msra.mxu0 %v678
    %715 = vmatprep.subr.mxu0 0.0
    %716 = vmatpush2.msra.mxu0 0.0
    %717 = vmatprep.subr.mxu0 0.0
    %718 = vmatpush2.msra.mxu0 0.0
    %719 = vmatprep.subr.mxu0 0.0
    %720 = vmatpush2.msra.mxu0 0.0
    %721 = vmatprep.subr.mxu0 0.0
    %722 = vmatpush2.msra.mxu0 0.0
    %723 = vmatprep.subr.mxu0 0.0
    %724 = vmatpush2.msra.mxu0 0.0
    %725 = vmatprep.subr.mxu0 0.0
    %726 = vmatpush2.msra.mxu0 0.0
    %727 = vmatprep.subr.mxu0 0.0
    %728 = vmatpush2.msra.mxu0 0.0
    %729 = vmatprep.subr.mxu0 0.0
    %730 = vmatpush2.msra.mxu0 0.0
    %731 = vmatprep.subr.mxu0 0.0
    %732 = vmatpush2.msra.mxu0 0.0
    %733 = vmatprep.subr.mxu0 0.0
    %734 = vmatpush2.msra.mxu0 0.0
    %735 = vmatprep.subr.mxu0 0.0
    %736 = vmatpush2.msra.mxu0 0.0
    %737 = vmatprep.subr.mxu0 0.0
    %738 = vmatpush2.msra.mxu0 0.0
    %739 = vmatprep.subr.mxu0 0.0
    %740 = vmatpush2.msra.mxu0 0.0
    %741 = vmatprep.subr.mxu0 0.0
    %742 = vmatpush2.msra.mxu0 0.0
    %743 = vmatprep.subr.mxu0 0.0
    %744 = vmatpush2.msra.mxu0 0.0
    %745 = vmatprep.subr.mxu0 0.0
    %746 = vmatpush2.msra.mxu0 0.0
    %747 = vmatprep.mubr.f32.mxu0 0.0
    %748 = vmatmul.mubr.f32.gmra.mxu0 %v681
    %v749 = vpop.f32.mrf.mxu0
    %v750 = vadd.f32 0.0, %v749
    %v751 = vpop.f32.mrf.mxu0
    %752 = vdwg.mxu0
    %v753 = vpack.c.bf16 %v750, %v750
    %v755 = vsel %vm166, %v753, 0
    %v758 = vsel %vm498, %v68, 0
    %760 = vmatprep.subr.bf16.mxu0 0
    %761 = vmatpush1.bf16.msra.mxu0 0
    %762 = vmatprep.subr.bf16.mxu0 0
    %763 = vmatpush1.bf16.msra.mxu0 0
    %764 = vmatprep.subr.bf16.mxu0 0
    %765 = vmatpush1.bf16.msra.mxu0 0
    %766 = vmatprep.subr.bf16.mxu0 0
    %767 = vmatpush1.bf16.msra.mxu0 0
    %768 = vmatprep.subr.bf16.mxu0 0
    %769 = vmatpush1.bf16.msra.mxu0 0
    %770 = vmatprep.subr.bf16.mxu0 0
    %771 = vmatpush1.bf16.msra.mxu0 0
    %772 = vmatprep.subr.bf16.mxu0 0
    %773 = vmatpush1.bf16.msra.mxu0 0
    %774 = vmatprep.subr.bf16.mxu0 0
    %775 = vmatpush1.bf16.msra.mxu0 %v758
    %776 = vmatprep.subr.bf16.mxu0 0
    %777 = vmatpush2.bf16.msra.mxu0 0
    %778 = vmatprep.subr.bf16.mxu0 0
    %779 = vmatpush2.bf16.msra.mxu0 0
    %780 = vmatprep.subr.bf16.mxu0 0
    %781 = vmatpush2.bf16.msra.mxu0 0
    %782 = vmatprep.subr.bf16.mxu0 0
    %783 = vmatpush2.bf16.msra.mxu0 0
    %784 = vmatprep.subr.bf16.mxu0 0
    %785 = vmatpush2.bf16.msra.mxu0 0
    %786 = vmatprep.subr.bf16.mxu0 0
    %787 = vmatpush2.bf16.msra.mxu0 0
    %788 = vmatprep.subr.bf16.mxu0 0
    %789 = vmatpush2.bf16.msra.mxu0 0
    %790 = vmatprep.subr.bf16.mxu0 0
    %791 = vmatpush2.bf16.msra.mxu0 0
    %792 = vmatprep.mubr.bf16.mxu0 0
    %793 = vmatmul.mubr.bf16.gmra.mxu0 %v755
    %v794 = vpop.f32.mrf.mxu0
    %v795 = vadd.f32 0.0, %v794
    %v796 = vpop.f32.mrf.mxu0
    %v797 = vpop.f32.mrf.mxu0
    %v798 = vpop.f32.mrf.mxu0
    %799 = vdwg.mxu0
    %v800 = vadd.f32 %v583, %v795
    %801 = vrot.lane.b32.xlu0 %v162, 104
    %v802 = vpop.permute.xlu0 %801
    %803 = vrot.lane.b32.xlu0 %v162, 72
    %v804 = vpop.permute.xlu0 %803
    %v805 = vsel %vm166, %v802, 0
    %v807 = vsel %vm166, %v804, 0
    %809 = vmatprep.subr.mxu0 0.0
    %810 = vmatpush1.xpose.msra.mxu0 0.0
    %811 = vmatprep.subr.mxu0 0.0
    %812 = vmatpush1.xpose.msra.mxu0 0.0
    %813 = vmatprep.subr.mxu0 0.0
    %814 = vmatpush1.xpose.msra.mxu0 0.0
    %815 = vmatprep.subr.mxu0 0.0
    %816 = vmatpush1.xpose.msra.mxu0 0.0
    %817 = vmatprep.subr.mxu0 0.0
    %818 = vmatpush1.xpose.msra.mxu0 0.0
    %819 = vmatprep.subr.mxu0 0.0
    %820 = vmatpush1.xpose.msra.mxu0 0.0
    %821 = vmatprep.subr.mxu0 0.0
    %822 = vmatpush1.xpose.msra.mxu0 0.0
    %823 = vmatprep.subr.mxu0 0.0
    %824 = vmatpush1.xpose.msra.mxu0 0.0
    %825 = vmatprep.subr.mxu0 0.0
    %826 = vmatpush1.xpose.msra.mxu0 0.0
    %827 = vmatprep.subr.mxu0 0.0
    %828 = vmatpush1.xpose.msra.mxu0 0.0
    %829 = vmatprep.subr.mxu0 0.0
    %830 = vmatpush1.xpose.msra.mxu0 0.0
    %831 = vmatprep.subr.mxu0 0.0
    %832 = vmatpush1.xpose.msra.mxu0 0.0
    %833 = vmatprep.subr.mxu0 0.0
    %834 = vmatpush1.xpose.msra.mxu0 0.0
    %835 = vmatprep.subr.mxu0 0.0
    %836 = vmatpush1.xpose.msra.mxu0 0.0
    %837 = vmatprep.subr.mxu0 0.0
    %838 = vmatpush1.xpose.msra.mxu0 0.0
    %839 = vmatprep.subr.mxu0 0.0
    %840 = vmatpush1.xpose.msra.mxu0 %v807
    %841 = vmatprep.subr.mxu0 0.0
    %842 = vmatpush2.xpose.msra.mxu0 0.0
    %843 = vmatprep.subr.mxu0 0.0
    %844 = vmatpush2.xpose.msra.mxu0 0.0
    %845 = vmatprep.subr.mxu0 0.0
    %846 = vmatpush2.xpose.msra.mxu0 0.0
    %847 = vmatprep.subr.mxu0 0.0
    %848 = vmatpush2.xpose.msra.mxu0 0.0
    %849 = vmatprep.subr.mxu0 0.0
    %850 = vmatpush2.xpose.msra.mxu0 0.0
    %851 = vmatprep.subr.mxu0 0.0
    %852 = vmatpush2.xpose.msra.mxu0 0.0
    %853 = vmatprep.subr.mxu0 0.0
    %854 = vmatpush2.xpose.msra.mxu0 0.0
    %855 = vmatprep.subr.mxu0 0.0
    %856 = vmatpush2.xpose.msra.mxu0 0.0
    %857 = vmatprep.subr.mxu0 0.0
    %858 = vmatpush2.xpose.msra.mxu0 0.0
    %859 = vmatprep.subr.mxu0 0.0
    %860 = vmatpush2.xpose.msra.mxu0 0.0
    %861 = vmatprep.subr.mxu0 0.0
    %862 = vmatpush2.xpose.msra.mxu0 0.0
    %863 = vmatprep.subr.mxu0 0.0
    %864 = vmatpush2.xpose.msra.mxu0 0.0
    %865 = vmatprep.subr.mxu0 0.0
    %866 = vmatpush2.xpose.msra.mxu0 0.0
    %867 = vmatprep.subr.mxu0 0.0
    %868 = vmatpush2.xpose.msra.mxu0 0.0
    %869 = vmatprep.subr.mxu0 0.0
    %870 = vmatpush2.xpose.msra.mxu0 0.0
    %871 = vmatprep.subr.mxu0 0.0
    %872 = vmatpush2.xpose.msra.mxu0 0.0
    %873 = vmatprep.mubr.f32.mxu0 0.0
    %874 = vmatmul.mubr.f32.gmra.mxu0 %v805
    %v875 = vpop.f32.mrf.mxu0
    %v876 = vadd.f32 %v83, %v875
    %v877 = vpop.f32.mrf.mxu0
    %878 = vdwg.mxu0
    %v879 = vsel %vm166, %v876, -inf
    %880 = vmax.xlane.f32.xlu0 %v879
    %v881 = vpop.xlane.xlu0 %880
    %v882 = vsub.f32 %v876, %v881
    %v883 = vmul.f32 %v882, 1.442695
    %v884 = vpow.pop %v883
    %v885 = vsel %vm166, %v884, 0.0
    %886 = vadd.xlane.f32.xlu0 %v885
    %v887 = vpop.xlane.xlu0 %886
    %v888 = vrcp.pop %v887
    %v889 = vmul.f32 %v884, %v888
    %890 = vrot.lane.b32.xlu0 %v162, 40
    %v891 = vpop.permute.xlu0 %890
    %v894 = vsel %vm166, %v889, 0
    %896 = vmatprep.subr.mxu0 0.0
    %897 = vmatpush1.msra.mxu0 0.0
    %898 = vmatprep.subr.mxu0 0.0
    %899 = vmatpush1.msra.mxu0 0.0
    %900 = vmatprep.subr.mxu0 0.0
    %901 = vmatpush1.msra.mxu0 0.0
    %902 = vmatprep.subr.mxu0 0.0
    %903 = vmatpush1.msra.mxu0 0.0
    %904 = vmatprep.subr.mxu0 0.0
    %905 = vmatpush1.msra.mxu0 0.0
    %906 = vmatprep.subr.mxu0 0.0
    %907 = vmatpush1.msra.mxu0 0.0
    %908 = vmatprep.subr.mxu0 0.0
    %909 = vmatpush1.msra.mxu0 0.0
    %910 = vmatprep.subr.mxu0 0.0
    %911 = vmatpush1.msra.mxu0 0.0
    %912 = vmatprep.subr.mxu0 0.0
    %913 = vmatpush1.msra.mxu0 0.0
    %914 = vmatprep.subr.mxu0 0.0
    %915 = vmatpush1.msra.mxu0 0.0
    %916 = vmatprep.subr.mxu0 0.0
    %917 = vmatpush1.msra.mxu0 0.0
    %918 = vmatprep.subr.mxu0 0.0
    %919 = vmatpush1.msra.mxu0 0.0
    %920 = vmatprep.subr.mxu0 0.0
    %921 = vmatpush1.msra.mxu0 0.0
    %922 = vmatprep.subr.mxu0 0.0
    %923 = vmatpush1.msra.mxu0 0.0
    %924 = vmatprep.subr.mxu0 0.0
    %925 = vmatpush1.msra.mxu0 0.0
    %926 = vmatprep.subr.mxu0 0.0
    %927 = vmatpush1.msra.mxu0 %v891
    %928 = vmatprep.subr.mxu0 0.0
    %929 = vmatpush2.msra.mxu0 0.0
    %930 = vmatprep.subr.mxu0 0.0
    %931 = vmatpush2.msra.mxu0 0.0
    %932 = vmatprep.subr.mxu0 0.0
    %933 = vmatpush2.msra.mxu0 0.0
    %934 = vmatprep.subr.mxu0 0.0
    %935 = vmatpush2.msra.mxu0 0.0
    %936 = vmatprep.subr.mxu0 0.0
    %937 = vmatpush2.msra.mxu0 0.0
    %938 = vmatprep.subr.mxu0 0.0
    %939 = vmatpush2.msra.mxu0 0.0
    %940 = vmatprep.subr.mxu0 0.0
    %941 = vmatpush2.msra.mxu0 0.0
    %942 = vmatprep.subr.mxu0 0.0
    %943 = vmatpush2.msra.mxu0 0.0
    %944 = vmatprep.subr.mxu0 0.0
    %945 = vmatpush2.msra.mxu0 0.0
    %946 = vmatprep.subr.mxu0 0.0
    %947 = vmatpush2.msra.mxu0 0.0
    %948 = vmatprep.subr.mxu0 0.0
    %949 = vmatpush2.msra.mxu0 0.0
    %950 = vmatprep.subr.mxu0 0.0
    %951 = vmatpush2.msra.mxu0 0.0
    %952 = vmatprep.subr.mxu0 0.0
    %953 = vmatpush2.msra.mxu0 0.0
    %954 = vmatprep.subr.mxu0 0.0
    %955 = vmatpush2.msra.mxu0 0.0
    %956 = vmatprep.subr.mxu0 0.0
    %957 = vmatpush2.msra.mxu0 0.0
    %958 = vmatprep.subr.mxu0 0.0
    %959 = vmatpush2.msra.mxu0 0.0
    %960 = vmatprep.mubr.f32.mxu0 0.0
    %961 = vmatmul.mubr.f32.gmra.mxu0 %v894
    %v962 = vpop.f32.mrf.mxu0
    %v963 = vadd.f32 0.0, %v962
    %v964 = vpop.f32.mrf.mxu0
    %965 = vdwg.mxu0
    %v966 = vpack.c.bf16 %v963, %v963
    %v968 = vsel %vm166, %v966, 0
    %v971 = vsel %vm498, %v69, 0
    %973 = vmatprep.subr.bf16.mxu0 0
    %974 = vmatpush1.bf16.msra.mxu0 0
    %975 = vmatprep.subr.bf16.mxu0 0
    %976 = vmatpush1.bf16.msra.mxu0 0
    %977 = vmatprep.subr.bf16.mxu0 0
    %978 = vmatpush1.bf16.msra.mxu0 0
    %979 = vmatprep.subr.bf16.mxu0 0
    %980 = vmatpush1.bf16.msra.mxu0 0
    %981 = vmatprep.subr.bf16.mxu0 0
    %982 = vmatpush1.bf16.msra.mxu0 0
    %983 = vmatprep.subr.bf16.mxu0 0
    %984 = vmatpush1.bf16.msra.mxu0 0
    %985 = vmatprep.subr.bf16.mxu0 0
    %986 = vmatpush1.bf16.msra.mxu0 0
    %987 = vmatprep.subr.bf16.mxu0 0
    %988 = vmatpush1.bf16.msra.mxu0 %v971
    %989 = vmatprep.subr.bf16.mxu0 0
    %990 = vmatpush2.bf16.msra.mxu0 0
    %991 = vmatprep.subr.bf16.mxu0 0
    %992 = vmatpush2.bf16.msra.mxu0 0
    %993 = vmatprep.subr.bf16.mxu0 0
    %994 = vmatpush2.bf16.msra.mxu0 0
    %995 = vmatprep.subr.bf16.mxu0 0
    %996 = vmatpush2.bf16.msra.mxu0 0
    %997 = vmatprep.subr.bf16.mxu0 0
    %998 = vmatpush2.bf16.msra.mxu0 0
    %999 = vmatprep.subr.bf16.mxu0 0
    %1000 = vmatpush2.bf16.msra.mxu0 0
    %1001 = vmatprep.subr.bf16.mxu0 0
    %1002 = vmatpush2.bf16.msra.mxu0 0
    %1003 = vmatprep.subr.bf16.mxu0 0
    %1004 = vmatpush2.bf16.msra.mxu0 0
    %1005 = vmatprep.mubr.bf16.mxu0 0
    %1006 = vmatmul.mubr.bf16.gmra.mxu0 %v968
    %v1007 = vpop.f32.mrf.mxu0
    %v1008 = vadd.f32 0.0, %v1007
    %v1009 = vpop.f32.mrf.mxu0
    %v1010 = vpop.f32.mrf.mxu0
    %v1011 = vpop.f32.mrf.mxu0
    %1012 = vdwg.mxu0
    %v1013 = vadd.f32 %v800, %v1008
    %v1014 = vadd.f32 %v53, %v1013
    %v1015 = vmul.f32 %v1014, %v1014
    %v1016 = vsel %vm85, %v1015, 0.0
    %1017 = vadd.xlane.f32.xlu0 %v1016
    %v1018 = vpop.xlane.xlu0 %1017
    %v1019 = vmul.f32 %v1018, %v89
    %v1020 = vadd.f32 %v1019, 1e-06
    %v1021 = vrsqrt.pop %v1020
    %v1022 = vmul.f32 %v1014, %v1021
    %v1023 = vmul.f32 %v1022, %v57
    %v1024 = vpack.c.bf16 %v1023, %v1023
    %v1029 = vunpack.c.l.b16 %v62
    %v1030 = vunpack.c.l.b16 %v63
    %v1031 = vunpack.c.l.b16 %v64
    %v1032 = vunpack.c.l.b16 %v65
    %v1033 = vpack.c.b16 %v1030, %v1029
    %v1034 = vpack.c.b16 %v1032, %v1031
    %v1038 = vsel %vm85, %v1024, 0
    %1040 = vmatprep.subr.bf16.mxu0 0
    %1041 = vmatpush1.bf16.msra.mxu0 0
    %1042 = vmatprep.subr.bf16.mxu0 0
    %1043 = vmatpush1.bf16.msra.mxu0 0
    %1044 = vmatprep.subr.bf16.mxu0 0
    %1045 = vmatpush1.bf16.msra.mxu0 0
    %1046 = vmatprep.subr.bf16.mxu0 0
    %1047 = vmatpush1.bf16.msra.mxu0 0
    %1048 = vmatprep.subr.bf16.mxu0 0
    %1049 = vmatpush1.bf16.msra.mxu0 0
    %1050 = vmatprep.subr.bf16.mxu0 0
    %1051 = vmatpush1.bf16.msra.mxu0 0
    %1052 = vmatprep.subr.bf16.mxu0 0
    %1053 = vmatpush1.bf16.msra.mxu0 %v1034
    %1054 = vmatprep.subr.bf16.mxu0 0
    %1055 = vmatpush1.bf16.msra.mxu0 %v1033
    %1056 = vmatprep.subr.bf16.mxu0 0
    %1057 = vmatpush2.bf16.msra.mxu0 0
    %1058 = vmatprep.subr.bf16.mxu0 0
    %1059 = vmatpush2.bf16.msra.mxu0 0
    %1060 = vmatprep.subr.bf16.mxu0 0
    %1061 = vmatpush2.bf16.msra.mxu0 0
    %1062 = vmatprep.subr.bf16.mxu0 0
    %1063 = vmatpush2.bf16.msra.mxu0 0
    %1064 = vmatprep.subr.bf16.mxu0 0
    %1065 = vmatpush2.bf16.msra.mxu0 0
    %1066 = vmatprep.subr.bf16.mxu0 0
    %1067 = vmatpush2.bf16.msra.mxu0 0
    %1068 = vmatprep.subr.bf16.mxu0 0
    %1069 = vmatpush2.bf16.msra.mxu0 0
    %1070 = vmatprep.subr.bf16.mxu0 0
    %1071 = vmatpush2.bf16.msra.mxu0 0
    %1072 = vmatprep.mubr.bf16.mxu0 0
    %1073 = vmatmul.mubr.bf16.gmra.mxu0 %v1038
    %v1074 = vpop.f32.mrf.mxu0
    %v1075 = vadd.f32 0.0, %v1074
    %v1076 = vpop.f32.mrf.mxu0
    %v1077 = vpop.f32.mrf.mxu0
    %v1078 = vpop.f32.mrf.mxu0
    %1079 = vdwg.mxu0
    %v1080 = vsub.f32 0.0, %v1075
    %v1081 = vmul.f32 %v1080, 1.442695
    %v1082 = vpow.pop %v1081
    %v1083 = vadd.f32 %v1082, 1.0
    %v1084 = vrcp.pop %v1083
    %v1085 = vmul.f32 %v1075, %v1084
    %1087 = vrot.lane.b32.xlu0 %v1075, 64
    %v1088 = vpop.permute.xlu0 %1087
    %v1090 = vmul.f32 %v1085, %v1088
    %v1091 = vpack.c.bf16 %v1090, %v1090
    %v1100 = vunpack.c.l.b16 %v70
    %v1101 = vunpack.c.l.b16 %v71
    %v1102 = vunpack.c.l.b16 %v72
    %v1103 = vunpack.c.l.b16 %v73
    %v1104 = vunpack.c.l.b16 %v74
    %v1105 = vunpack.c.l.b16 %v75
    %v1106 = vunpack.c.l.b16 %v76
    %v1107 = vunpack.c.l.b16 %v77
    %v1108 = vpack.c.b16 %v1101, %v1100
    %v1109 = vpack.c.b16 %v1103, %v1102
    %v1110 = vpack.c.b16 %v1105, %v1104
    %v1111 = vpack.c.b16 %v1107, %v1106
    %vm1116 = vcmask 523264
    %v1118 = vsel %vm1116, %v1091, 0
    %1120 = vmatprep.subr.bf16.mxu0 0
    %1121 = vmatpush1.bf16.msra.mxu0 0
    %1122 = vmatprep.subr.bf16.mxu0 0
    %1123 = vmatpush1.bf16.msra.mxu0 0
    %1124 = vmatprep.subr.bf16.mxu0 0
    %1125 = vmatpush1.bf16.msra.mxu0 0
    %1126 = vmatprep.subr.bf16.mxu0 0
    %1127 = vmatpush1.bf16.msra.mxu0 0
    %1128 = vmatprep.subr.bf16.mxu0 0
    %1129 = vmatpush1.bf16.msra.mxu0 %v1111
    %1130 = vmatprep.subr.bf16.mxu0 0
    %1131 = vmatpush1.bf16.msra.mxu0 %v1110
    %1132 = vmatprep.subr.bf16.mxu0 0
    %1133 = vmatpush1.bf16.msra.mxu0 %v1109
    %1134 = vmatprep.subr.bf16.mxu0 0
    %1135 = vmatpush1.bf16.msra.mxu0 %v1108
    %1136 = vmatprep.subr.bf16.mxu0 0
    %1137 = vmatpush2.bf16.msra.mxu0 0
    %1138 = vmatprep.subr.bf16.mxu0 0
    %1139 = vmatpush2.bf16.msra.mxu0 0
    %1140 = vmatprep.subr.bf16.mxu0 0
    %1141 = vmatpush2.bf16.msra.mxu0 0
    %1142 = vmatprep.subr.bf16.mxu0 0
    %1143 = vmatpush2.bf16.msra.mxu0 0
    %1144 = vmatprep.subr.bf16.mxu0 0
    %1145 = vmatpush2.bf16.msra.mxu0 0
    %1146 = vmatprep.subr.bf16.mxu0 0
    %1147 = vmatpush2.bf16.msra.mxu0 0
    %1148 = vmatprep.subr.bf16.mxu0 0
    %1149 = vmatpush2.bf16.msra.mxu0 0
    %1150 = vmatprep.subr.bf16.mxu0 0
    %1151 = vmatpush2.bf16.msra.mxu0 0
    %1152 = vmatprep.mubr.bf16.mxu0 0
    %1153 = vmatmul.mubr.bf16.gmra.mxu0 %v1118
    %v1154 = vpop.f32.mrf.mxu0
    %v1155 = vadd.f32 0.0, %v1154
    %v1156 = vpop.f32.mrf.mxu0
    %v1157 = vpop.f32.mrf.mxu0
    %v1158 = vpop.f32.mrf.mxu0
    %1159 = vdwg.mxu0
    %v1160 = vadd.f32 %v1014, %v1155
    %1161 = vst.msk [vmem:[#allocation8] sm:$0xff] %vm85, %v1160
    // Predicated region
    $region26: #{transformer_block.1} parent=1 // pred_check
      _
    $region27: #{transformer_block.1} parent=1 // pred_check_branch
      %1163 = sbr.rel (0) target = $region29
    $region28: #{transformer_block.1} parent=1 // pred_region
      %s1165 = ssub.s32 128, 128
      %1166 = vsyncadd [#allocation4], %s1165
      %s1168 = sshll.u32 [#allocation8], 4
      %s1169 = int_to_ptr.vmem [resolvable:$true] %s1168
      %1171 = dma.vmem_to_hbm [thread:$0]  %s1169, 128, %s3, [#allocation4]
    $region29: #{transformer_block.1} parent=1 // pred_fallthru
      _
    // Predicated region
    $region30: #{transformer_block.1} parent=1 // pred_check
      _
    $region31: #{transformer_block.1} parent=1 // pred_check_branch
      %1173 = sbr.rel (0) target = $region33
    $region32: #{transformer_block.1} parent=1 // pred_region
      %1174 = dma.done [#allocation4], 128
    $region33: #{transformer_block.1} parent=1 // pred_fallthru
      _
    %1175 = vsyncpa [#allocation3], 1
    %1176 = vsyncpa [#allocation6], 1
    %1177 = vsyncpa [#allocation4], 1

</llo_original>
